<compile_context>
chip_gen: v7x
topology: tpu7x:2x2x1
jax: 0.10.0
libtpu: 0.0.40
codegen_flags: <defaults>
</compile_context>

<pallas_src>
import jax
import jax.numpy as jnp
from jax import lax
from jax.experimental import pallas as pl
from jax.experimental.pallas import tpu as pltpu

BN_EPS = 1e-5


def _fold_bn(w, gamma, beta, mean, var):
    """Fold eval-mode BatchNorm into the preceding bias-free conv (per out-channel)."""
    scale = gamma / jnp.sqrt(var + BN_EPS)
    w_eff = w * scale.reshape((-1,) + (1,) * (w.ndim - 1))
    b_eff = beta - mean * scale
    return w_eff, b_eff


def _make_kernel(*, W, HW, halo, ksize, c_mid, has_expand, use_residual, downsample):
    r = ksize // 2

    def kernel(*refs):
        i = 0
        x_ref = refs[i]; i += 1
        if has_expand:
            w1_ref, b1_ref = refs[i], refs[i + 1]; i += 2
        wd_ref, bd_ref, w3_ref, b3_ref = refs[i:i + 4]; i += 4
        if downsample:
            sel_ref = refs[i]; i += 1
        o_ref, pad_ref = refs[i], refs[i + 1]

        x = x_ref[0].astype(jnp.float32)                       # (C_in, HW)

        # ---- expand 1x1 conv (+ folded BN) + ReLU ---------------------------
        if has_expand:
            a = jnp.dot(w1_ref[...], x,
                        preferred_element_type=jnp.float32) + b1_ref[...]
            a = jnp.maximum(a, 0.0)                            # (C_mid, HW)
        else:
            a = x                                              # C_mid == C_in

        # ---- depthwise ksize x ksize conv (stride-1 positions), pad r -------
        # Zero-halo scratch in flattened (C_mid, HW) layout: out-of-image rows
        # read zeros from the halo; out-of-image columns are masked explicitly.
        zeros_halo = jnp.zeros((c_mid, halo), jnp.float32)
        pad_ref[:, 0:halo] = zeros_halo
        pad_ref[:, halo + HW:2 * halo + HW] = zeros_halo
        pad_ref[:, halo:halo + HW] = a

        hw_iota = lax.broadcasted_iota(jnp.int32, (1, HW), 1)
        if W > 0 and (W & (W - 1)) == 0:
            wpos = hw_iota & (W - 1)                           # W is a power of two
        else:
            wpos = hw_iota % W
        # Hoist the per-column validity masks out of the tap loop.
        col_ok = {dx: (wpos + dx >= 0) & (wpos + dx < W)
                  for dx in range(-r, r + 1) if dx != 0}

        acc = jnp.zeros((c_mid, HW), jnp.float32)
        tap = 0
        for dy in range(-r, r + 1):
            for dx in range(-r, r + 1):
                off = dy * W + dx
                win = pad_ref[:, halo + off:halo + off + HW]   # (C_mid, HW)
                if dx != 0:
                    win = jnp.where(col_ok[dx], win, 0.0)
                acc = acc + win * wd_ref[tap]                  # (C_mid, 1) bcast
                tap += 1
        a = jnp.maximum(acc + bd_ref[...], 0.0)                # (C_mid, HW)

        # ---- stride-2 spatial downsample (exact 0/1 selection matmul) -------
        if downsample:
            a = jnp.dot(a, sel_ref[...],
                        preferred_element_type=jnp.float32)    # (C_mid, HW_out)

        # ---- project 1x1 conv (+ folded BN), no activation ------------------
        y = jnp.dot(w3_ref[...], a,
                    preferred_element_type=jnp.float32) + b3_ref[...]

        if use_residual:
            y = y + x
        o_ref[0] = y.astype(o_ref.dtype)

    return kernel


def inverted_residual(x, params, *, stride, expand_ratio, kernel_size=3):
    """x: (N, C_in, H, W) float32.  params: conv weights + BN (gamma, beta, mean, var)."""
    assert stride in (1, 2)

    N, C_in, H, W = x.shape
    HW = H * W
    ksize = kernel_size
    r = ksize // 2
    has_expand = expand_ratio != 1
    C_mid = int(round(C_in * expand_ratio))
    C_out = params["w_proj"].shape[0]
    use_residual = (stride == 1) and (C_in == C_out)
    downsample = stride == 2

    # Fold BN (eval mode) into the convolutions.
    wd_eff, bd_eff = _fold_bn(params["w_dw"].reshape(C_mid, ksize * ksize),
                              *params["bn_dw"])
    w3_eff, b3_eff = _fold_bn(params["w_proj"].reshape(C_out, C_mid),
                              *params["bn_proj"])

    # Channels-first, lane-dense layout: (N, C, H*W). Free reshape, no transposes.
    x3 = x.reshape(N, C_in, HW)

    inputs = [x3]
    in_specs = [pl.BlockSpec((1, C_in, HW), lambda n: (n, 0, 0))]
    if has_expand:
        w1_eff, b1_eff = _fold_bn(params["w_exp"].reshape(C_mid, C_in),
                                  *params["bn_exp"])
        inputs += [w1_eff, b1_eff.reshape(C_mid, 1)]
        in_specs += [pl.BlockSpec((C_mid, C_in), lambda n: (0, 0)),
                     pl.BlockSpec((C_mid, 1), lambda n: (0, 0))]
    inputs += [jnp.transpose(wd_eff).reshape(ksize * ksize, C_mid, 1),
               bd_eff.reshape(C_mid, 1),
               w3_eff,
               b3_eff.reshape(C_out, 1)]
    in_specs += [pl.BlockSpec((ksize * ksize, C_mid, 1), lambda n: (0, 0, 0)),
                 pl.BlockSpec((C_mid, 1), lambda n: (0, 0)),
                 pl.BlockSpec((C_out, C_mid), lambda n: (0, 0)),
                 pl.BlockSpec((C_out, 1), lambda n: (0, 0))]

    if downsample:
        H_out = (H + 2 * r - ksize) // 2 + 1
        W_out = (W + 2 * r - ksize) // 2 + 1
        HW_out = H_out * W_out
        # 0/1 selection matrix picking the stride-2 output positions from the
        # full-resolution (flattened) depthwise output.
        src = (2 * jnp.arange(H_out, dtype=jnp.int32))[:, None] * W \
            + (2 * jnp.arange(W_out, dtype=jnp.int32))[None, :]
        sel = jnp.zeros((HW, HW_out), jnp.float32).at[
            src.reshape(-1), jnp.arange(HW_out, dtype=jnp.int32)].set(1.0)
        inputs += [sel]
        in_specs += [pl.BlockSpec((HW, HW_out), lambda n: (0, 0))]
    else:
        H_out, W_out, HW_out = H, W, HW

    # Zero halo big enough for the largest spatial shift, lane-tile aligned.
    halo = max(128, ((r * (W + 1) + 127) // 128) * 128)

    kernel = _make_kernel(W=W, HW=HW, halo=halo, ksize=ksize, c_mid=C_mid,
                          has_expand=has_expand, use_residual=use_residual,
                          downsample=downsample)

    out = pl.pallas_call(
        kernel,
        out_shape=jax.ShapeDtypeStruct((N, C_out, HW_out), x.dtype),
        grid_spec=pltpu.PrefetchScalarGridSpec(
            num_scalar_prefetch=0,
            grid=(N,),
            in_specs=in_specs,
            out_specs=pl.BlockSpec((1, C_out, HW_out), lambda n: (n, 0, 0)),
            scratch_shapes=[pltpu.VMEM((C_mid, 2 * halo + HW), jnp.float32)],
        ),
        compiler_params=pltpu.CompilerParams(
            dimension_semantics=("parallel",),
            vmem_limit_bytes=32 * 1024 * 1024),
    )(*inputs)

    return out.reshape(N, C_out, H_out, W_out)


# --------------------------- plain-JAX reference -----------------------------

def _conv2d(x, w, *, stride=1, padding=0, groups=1):
    return lax.conv_general_dilated(
        x, w, window_strides=(stride, stride),
        padding=[(padding, padding), (padding, padding)],
        dimension_numbers=("NCHW", "OIHW", "NCHW"),
        feature_group_count=groups)


def _bn_ref(x, gamma, beta, mean, var):
    inv = (gamma / jnp.sqrt(var + BN_EPS))[None, :, None, None]
    return (x - mean[None, :, None, None]) * inv + beta[None, :, None, None]


def inverted_residual_ref(x, params, *, stride, expand_ratio, kernel_size=3):
    C_in = x.shape[1]
    h = x
    if expand_ratio != 1:
        h = _conv2d(h, params["w_exp"])
        h = jnp.maximum(_bn_ref(h, *params["bn_exp"]), 0.0)
    pad = (kernel_size - 1) // 2
    h = _conv2d(h, params["w_dw"], stride=stride, padding=pad,
                groups=params["w_dw"].shape[0])
    h = jnp.maximum(_bn_ref(h, *params["bn_dw"]), 0.0)
    h = _conv2d(h, params["w_proj"])
    h = _bn_ref(h, *params["bn_proj"])
    if stride == 1 and C_in == h.shape[1]:
        h = h + x
    return h


if __name__ == "__main__":
    N, H, W, ksize = 2, 16, 16, 3
    key = jax.random.PRNGKey(0)

    def bn_init(k, c):
        kg, kb, km, kv = jax.random.split(k, 4)
        gamma = 1.0 + 0.1 * jax.random.normal(kg, (c,), jnp.float32)
        beta = 0.1 * jax.random.normal(kb, (c,), jnp.float32)
        mean = 0.1 * jax.random.normal(km, (c,), jnp.float32)
        var = 0.5 + jnp.abs(jax.random.normal(kv, (c,), jnp.float32))
        return gamma, beta, mean, var

    def make_params(k, c_in, c_out, expand_ratio):
        c_mid = int(round(c_in * expand_ratio))
        ks = jax.random.split(k, 7)
        p = {}
        if expand_ratio != 1:
            p["w_exp"] = 0.2 * jax.random.normal(ks[1], (c_mid, c_in, 1, 1), jnp.float32)
            p["bn_exp"] = bn_init(ks[2], c_mid)
        p["w_dw"] = 0.2 * jax.random.normal(ks[3], (c_mid, 1, ksize, ksize), jnp.float32)
        p["bn_dw"] = bn_init(ks[4], c_mid)
        p["w_proj"] = 0.2 * jax.random.normal(ks[5], (c_out, c_mid, 1, 1), jnp.float32)
        p["bn_proj"] = bn_init(ks[6], c_out)
        return p

    # (name, C_in, C_out, stride, expand_ratio) — typical MobileNet block configs.
    configs = [
        ("expand6_stride1_residual", 16, 16, 1, 6),
        ("expand6_stride2_downsample", 16, 24, 2, 6),
        ("expand1_stride1_residual", 16, 16, 1, 1),
    ]

    kx, kp = jax.random.split(key)
    for name, c_in, c_out, stride, er in configs:
        kx, k1 = jax.random.split(kx)
        kp, k2 = jax.random.split(kp)
        x = jax.random.normal(k1, (N, c_in, H, W), jnp.float32)
        params = make_params(k2, c_in, c_out, er)

        out = inverted_residual(x, params, stride=stride,
                                expand_ratio=er, kernel_size=ksize)
        out = jax.block_until_ready(out)

        ref = inverted_residual_ref(x, params, stride=stride,
                                    expand_ratio=er, kernel_size=ksize)
        assert out.shape == ref.shape, (name, out.shape, ref.shape)
        err = float(jnp.max(jnp.abs(out - ref)))
        assert jnp.allclose(out, ref, atol=5e-4, rtol=5e-4), \
            f"{name}: mismatch vs reference, max abs err={err}"

    print("KERNEL_OK")
</pallas_src>

<mosaic_0001>
module attributes {stable_mosaic.version = 11 : i64} {
  func.func @kernel(%arg0: i32, %arg1: memref<1x16x256xf32, #tpu.memory_space<vmem>>, %arg2: memref<96x16xf32, #tpu.memory_space<vmem>>, %arg3: memref<96x1xf32, #tpu.memory_space<vmem>>, %arg4: memref<9x96x1xf32, #tpu.memory_space<vmem>>, %arg5: memref<96x1xf32, #tpu.memory_space<vmem>>, %arg6: memref<16x96xf32, #tpu.memory_space<vmem>>, %arg7: memref<16x1xf32, #tpu.memory_space<vmem>>, %arg8: memref<1x16x256xf32, #tpu.memory_space<vmem>>, %arg9: memref<96x512xf32, #tpu.memory_space<vmem>>) attributes {dimension_semantics = [#tpu.dimension_semantics<parallel>], iteration_bounds = array<i64: 2>, scalar_prefetch = 0 : i64, scratch_operands = 1 : i64, tpu.core_type = #tpu.core_type<tc>, window_params = [{transform_indices = @transform_0, window_bounds = array<i64: 1, 16, 256>}, {pipeline_mode = #tpu.pipeline_mode<synchronous>, transform_indices = @transform_1, window_bounds = array<i64: 96, 16>}, {pipeline_mode = #tpu.pipeline_mode<synchronous>, transform_indices = @transform_2, window_bounds = array<i64: 96, 1>}, {pipeline_mode = #tpu.pipeline_mode<synchronous>, transform_indices = @transform_3, window_bounds = array<i64: 9, 96, 1>}, {pipeline_mode = #tpu.pipeline_mode<synchronous>, transform_indices = @transform_4, window_bounds = array<i64: 96, 1>}, {pipeline_mode = #tpu.pipeline_mode<synchronous>, transform_indices = @transform_5, window_bounds = array<i64: 16, 96>}, {pipeline_mode = #tpu.pipeline_mode<synchronous>, transform_indices = @transform_6, window_bounds = array<i64: 16, 1>}, {transform_indices = @transform_7, window_bounds = array<i64: 1, 16, 256>}]} {
    %c0 = arith.constant 0 : index
    %c0_0 = arith.constant 0 : index
    %c0_1 = arith.constant 0 : index
    %0 = vector.load %arg1[%c0, %c0_0, %c0_1] : memref<1x16x256xf32, #tpu.memory_space<vmem>>, vector<1x16x256xf32>
    %1 = vector.shape_cast %0 : vector<1x16x256xf32> to vector<16x256xf32>
    %c0_2 = arith.constant 0 : index
    %c0_3 = arith.constant 0 : index
    %2 = vector.load %arg2[%c0_2, %c0_3] : memref<96x16xf32, #tpu.memory_space<vmem>>, vector<96x16xf32>
    %cst = arith.constant dense<0.000000e+00> : vector<96x256xf32>
    %3 = tpu.matmul %2, %1, %cst {dimension_numbers = #tpu.dot_dimension_numbers<[1], [0], [0], [1], [0, 0, 1, 1], [], []>} : vector<96x16xf32>, vector<16x256xf32>, vector<96x256xf32> -> vector<96x256xf32>
    %c0_4 = arith.constant 0 : index
    %c0_5 = arith.constant 0 : index
    %4 = vector.load %arg3[%c0_4, %c0_5] : memref<96x1xf32, #tpu.memory_space<vmem>>, vector<96x1xf32>
    %5 = vector.broadcast %4 : vector<96x1xf32> to vector<96x256xf32>
    %6 = arith.addf %3, %5 : vector<96x256xf32>
    %cst_6 = arith.constant 0.000000e+00 : f32
    %7 = vector.broadcast %cst_6 : f32 to vector<96x256xf32>
    %8 = arith.maximumf %6, %7 : vector<96x256xf32>
    %cst_7 = arith.constant 0.000000e+00 : f32
    %9 = vector.broadcast %cst_7 : f32 to vector<96x128xf32>
    %c0_8 = arith.constant 0 : index
    %c0_9 = arith.constant 0 : index
    %10 = vector.load %arg9[%c0_8, %c0_9] : memref<96x512xf32, #tpu.memory_space<vmem>>, vector<96x128xf32>
    tpu.vector_store %arg9[%c0_8, %c0_9], %9 {strides = array<i32>} : memref<96x512xf32, #tpu.memory_space<vmem>>, vector<96x128xf32>,
    %c0_10 = arith.constant 0 : index
    %c384 = arith.constant 384 : index
    %11 = vector.load %arg9[%c0_10, %c384] : memref<96x512xf32, #tpu.memory_space<vmem>>, vector<96x128xf32>
    tpu.vector_store %arg9[%c0_10, %c384], %9 {strides = array<i32>} : memref<96x512xf32, #tpu.memory_space<vmem>>, vector<96x128xf32>,
    %c0_11 = arith.constant 0 : index
    %c128 = arith.constant 128 : index
    %12 = vector.load %arg9[%c0_11, %c128] : memref<96x512xf32, #tpu.memory_space<vmem>>, vector<96x256xf32>
    tpu.vector_store %arg9[%c0_11, %c128], %8 {strides = array<i32>} : memref<96x512xf32, #tpu.memory_space<vmem>>, vector<96x256xf32>,
    %13 = tpu.iota {dimensions = array<i32: 1>} : vector<1x256xi32>
    %c15_i32 = arith.constant 15 : i32
    %14 = vector.broadcast %c15_i32 : i32 to vector<1x256xi32>
    %15 = arith.andi %13, %14 : vector<1x256xi32>
    %c-1_i32 = arith.constant -1 : i32
    %16 = vector.broadcast %c-1_i32 : i32 to vector<1x256xi32>
    %17 = arith.addi %15, %16 : vector<1x256xi32>
    %c0_i32 = arith.constant 0 : i32
    %18 = vector.broadcast %c0_i32 : i32 to vector<1x256xi32>
    %19 = arith.cmpi sge, %17, %18 : vector<1x256xi32>
    %c-1_i32_12 = arith.constant -1 : i32
    %20 = vector.broadcast %c-1_i32_12 : i32 to vector<1x256xi32>
    %21 = arith.addi %15, %20 : vector<1x256xi32>
    %c16_i32 = arith.constant 16 : i32
    %22 = vector.broadcast %c16_i32 : i32 to vector<1x256xi32>
    %23 = arith.cmpi slt, %21, %22 : vector<1x256xi32>
    %24 = arith.andi %19, %23 : vector<1x256xi1>
    %c1_i32 = arith.constant 1 : i32
    %25 = vector.broadcast %c1_i32 : i32 to vector<1x256xi32>
    %26 = arith.addi %15, %25 : vector<1x256xi32>
    %c0_i32_13 = arith.constant 0 : i32
    %27 = vector.broadcast %c0_i32_13 : i32 to vector<1x256xi32>
    %28 = arith.cmpi sge, %26, %27 : vector<1x256xi32>
    %c1_i32_14 = arith.constant 1 : i32
    %29 = vector.broadcast %c1_i32_14 : i32 to vector<1x256xi32>
    %30 = arith.addi %15, %29 : vector<1x256xi32>
    %c16_i32_15 = arith.constant 16 : i32
    %31 = vector.broadcast %c16_i32_15 : i32 to vector<1x256xi32>
    %32 = arith.cmpi slt, %30, %31 : vector<1x256xi32>
    %33 = arith.andi %28, %32 : vector<1x256xi1>
    %cst_16 = arith.constant 0.000000e+00 : f32
    %34 = vector.broadcast %cst_16 : f32 to vector<96x256xf32>
    %c0_17 = arith.constant 0 : index
    %c111 = arith.constant 111 : index
    %35 = vector.load %arg9[%c0_17, %c111] : memref<96x512xf32, #tpu.memory_space<vmem>>, vector<96x256xf32>
    %cst_18 = arith.constant 0.000000e+00 : f32
    %36 = vector.shape_cast %24 : vector<1x256xi1> to vector<1x256xi1>
    %37 = vector.broadcast %36 : vector<1x256xi1> to vector<96x256xi1>
    %38 = vector.broadcast %cst_18 : f32 to vector<96x256xf32>
    %39 = arith.select %37, %35, %38 : vector<96x256xi1>, vector<96x256xf32>
    %c0_19 = arith.constant 0 : index
    %c0_20 = arith.constant 0 : index
    %c0_21 = arith.constant 0 : index
    %40 = vector.load %arg4[%c0_19, %c0_20, %c0_21] : memref<9x96x1xf32, #tpu.memory_space<vmem>>, vector<1x96x1xf32>
    %41 = vector.shape_cast %40 : vector<1x96x1xf32> to vector<96x1xf32>
    %42 = vector.broadcast %41 : vector<96x1xf32> to vector<96x256xf32>
    %43 = arith.mulf %39, %42 : vector<96x256xf32>
    %44 = arith.addf %34, %43 : vector<96x256xf32>
    %c0_22 = arith.constant 0 : index
    %c112 = arith.constant 112 : index
    %45 = vector.load %arg9[%c0_22, %c112] : memref<96x512xf32, #tpu.memory_space<vmem>>, vector<96x256xf32>
    %c1 = arith.constant 1 : index
    %c0_23 = arith.constant 0 : index
    %c0_24 = arith.constant 0 : index
    %46 = vector.load %arg4[%c1, %c0_23, %c0_24] : memref<9x96x1xf32, #tpu.memory_space<vmem>>, vector<1x96x1xf32>
    %47 = vector.shape_cast %46 : vector<1x96x1xf32> to vector<96x1xf32>
    %48 = vector.broadcast %47 : vector<96x1xf32> to vector<96x256xf32>
    %49 = arith.mulf %45, %48 : vector<96x256xf32>
    %50 = arith.addf %44, %49 : vector<96x256xf32>
    %c0_25 = arith.constant 0 : index
    %c113 = arith.constant 113 : index
    %51 = vector.load %arg9[%c0_25, %c113] : memref<96x512xf32, #tpu.memory_space<vmem>>, vector<96x256xf32>
    %cst_26 = arith.constant 0.000000e+00 : f32
    %52 = vector.shape_cast %33 : vector<1x256xi1> to vector<1x256xi1>
    %53 = vector.broadcast %52 : vector<1x256xi1> to vector<96x256xi1>
    %54 = vector.broadcast %cst_26 : f32 to vector<96x256xf32>
    %55 = arith.select %53, %51, %54 : vector<96x256xi1>, vector<96x256xf32>
    %c2 = arith.constant 2 : index
    %c0_27 = arith.constant 0 : index
    %c0_28 = arith.constant 0 : index
    %56 = vector.load %arg4[%c2, %c0_27, %c0_28] : memref<9x96x1xf32, #tpu.memory_space<vmem>>, vector<1x96x1xf32>
    %57 = vector.shape_cast %56 : vector<1x96x1xf32> to vector<96x1xf32>
    %58 = vector.broadcast %57 : vector<96x1xf32> to vector<96x256xf32>
    %59 = arith.mulf %55, %58 : vector<96x256xf32>
    %60 = arith.addf %50, %59 : vector<96x256xf32>
    %c0_29 = arith.constant 0 : index
    %c127 = arith.constant 127 : index
    %61 = vector.load %arg9[%c0_29, %c127] : memref<96x512xf32, #tpu.memory_space<vmem>>, vector<96x256xf32>
    %cst_30 = arith.constant 0.000000e+00 : f32
    %62 = vector.shape_cast %24 : vector<1x256xi1> to vector<1x256xi1>
    %63 = vector.broadcast %62 : vector<1x256xi1> to vector<96x256xi1>
    %64 = vector.broadcast %cst_30 : f32 to vector<96x256xf32>
    %65 = arith.select %63, %61, %64 : vector<96x256xi1>, vector<96x256xf32>
    %c3 = arith.constant 3 : index
    %c0_31 = arith.constant 0 : index
    %c0_32 = arith.constant 0 : index
    %66 = vector.load %arg4[%c3, %c0_31, %c0_32] : memref<9x96x1xf32, #tpu.memory_space<vmem>>, vector<1x96x1xf32>
    %67 = vector.shape_cast %66 : vector<1x96x1xf32> to vector<96x1xf32>
    %68 = vector.broadcast %67 : vector<96x1xf32> to vector<96x256xf32>
    %69 = arith.mulf %65, %68 : vector<96x256xf32>
    %70 = arith.addf %60, %69 : vector<96x256xf32>
    %c0_33 = arith.constant 0 : index
    %c128_34 = arith.constant 128 : index
    %71 = vector.load %arg9[%c0_33, %c128_34] : memref<96x512xf32, #tpu.memory_space<vmem>>, vector<96x256xf32>
    %c4 = arith.constant 4 : index
    %c0_35 = arith.constant 0 : index
    %c0_36 = arith.constant 0 : index
    %72 = vector.load %arg4[%c4, %c0_35, %c0_36] : memref<9x96x1xf32, #tpu.memory_space<vmem>>, vector<1x96x1xf32>
    %73 = vector.shape_cast %72 : vector<1x96x1xf32> to vector<96x1xf32>
    %74 = vector.broadcast %73 : vector<96x1xf32> to vector<96x256xf32>
    %75 = arith.mulf %71, %74 : vector<96x256xf32>
    %76 = arith.addf %70, %75 : vector<96x256xf32>
    %c0_37 = arith.constant 0 : index
    %c129 = arith.constant 129 : index
    %77 = vector.load %arg9[%c0_37, %c129] : memref<96x512xf32, #tpu.memory_space<vmem>>, vector<96x256xf32>
    %cst_38 = arith.constant 0.000000e+00 : f32
    %78 = vector.shape_cast %33 : vector<1x256xi1> to vector<1x256xi1>
    %79 = vector.broadcast %78 : vector<1x256xi1> to vector<96x256xi1>
    %80 = vector.broadcast %cst_38 : f32 to vector<96x256xf32>
    %81 = arith.select %79, %77, %80 : vector<96x256xi1>, vector<96x256xf32>
    %c5 = arith.constant 5 : index
    %c0_39 = arith.constant 0 : index
    %c0_40 = arith.constant 0 : index
    %82 = vector.load %arg4[%c5, %c0_39, %c0_40] : memref<9x96x1xf32, #tpu.memory_space<vmem>>, vector<1x96x1xf32>
    %83 = vector.shape_cast %82 : vector<1x96x1xf32> to vector<96x1xf32>
    %84 = vector.broadcast %83 : vector<96x1xf32> to vector<96x256xf32>
    %85 = arith.mulf %81, %84 : vector<96x256xf32>
    %86 = arith.addf %76, %85 : vector<96x256xf32>
    %c0_41 = arith.constant 0 : index
    %c143 = arith.constant 143 : index
    %87 = vector.load %arg9[%c0_41, %c143] : memref<96x512xf32, #tpu.memory_space<vmem>>, vector<96x256xf32>
    %cst_42 = arith.constant 0.000000e+00 : f32
    %88 = vector.shape_cast %24 : vector<1x256xi1> to vector<1x256xi1>
    %89 = vector.broadcast %88 : vector<1x256xi1> to vector<96x256xi1>
    %90 = vector.broadcast %cst_42 : f32 to vector<96x256xf32>
    %91 = arith.select %89, %87, %90 : vector<96x256xi1>, vector<96x256xf32>
    %c6 = arith.constant 6 : index
    %c0_43 = arith.constant 0 : index
    %c0_44 = arith.constant 0 : index
    %92 = vector.load %arg4[%c6, %c0_43, %c0_44] : memref<9x96x1xf32, #tpu.memory_space<vmem>>, vector<1x96x1xf32>
    %93 = vector.shape_cast %92 : vector<1x96x1xf32> to vector<96x1xf32>
    %94 = vector.broadcast %93 : vector<96x1xf32> to vector<96x256xf32>
    %95 = arith.mulf %91, %94 : vector<96x256xf32>
    %96 = arith.addf %86, %95 : vector<96x256xf32>
    %c0_45 = arith.constant 0 : index
    %c144 = arith.constant 144 : index
    %97 = vector.load %arg9[%c0_45, %c144] : memref<96x512xf32, #tpu.memory_space<vmem>>, vector<96x256xf32>
    %c7 = arith.constant 7 : index
    %c0_46 = arith.constant 0 : index
    %c0_47 = arith.constant 0 : index
    %98 = vector.load %arg4[%c7, %c0_46, %c0_47] : memref<9x96x1xf32, #tpu.memory_space<vmem>>, vector<1x96x1xf32>
    %99 = vector.shape_cast %98 : vector<1x96x1xf32> to vector<96x1xf32>
    %100 = vector.broadcast %99 : vector<96x1xf32> to vector<96x256xf32>
    %101 = arith.mulf %97, %100 : vector<96x256xf32>
    %102 = arith.addf %96, %101 : vector<96x256xf32>
    %c0_48 = arith.constant 0 : index
    %c145 = arith.constant 145 : index
    %103 = vector.load %arg9[%c0_48, %c145] : memref<96x512xf32, #tpu.memory_space<vmem>>, vector<96x256xf32>
    %cst_49 = arith.constant 0.000000e+00 : f32
    %104 = vector.shape_cast %33 : vector<1x256xi1> to vector<1x256xi1>
    %105 = vector.broadcast %104 : vector<1x256xi1> to vector<96x256xi1>
    %106 = vector.broadcast %cst_49 : f32 to vector<96x256xf32>
    %107 = arith.select %105, %103, %106 : vector<96x256xi1>, vector<96x256xf32>
    %c8 = arith.constant 8 : index
    %c0_50 = arith.constant 0 : index
    %c0_51 = arith.constant 0 : index
    %108 = vector.load %arg4[%c8, %c0_50, %c0_51] : memref<9x96x1xf32, #tpu.memory_space<vmem>>, vector<1x96x1xf32>
    %109 = vector.shape_cast %108 : vector<1x96x1xf32> to vector<96x1xf32>
    %110 = vector.broadcast %109 : vector<96x1xf32> to vector<96x256xf32>
    %111 = arith.mulf %107, %110 : vector<96x256xf32>
    %112 = arith.addf %102, %111 : vector<96x256xf32>
    %c0_52 = arith.constant 0 : index
    %c0_53 = arith.constant 0 : index
    %113 = vector.load %arg5[%c0_52, %c0_53] : memref<96x1xf32, #tpu.memory_space<vmem>>, vector<96x1xf32>
    %114 = vector.broadcast %113 : vector<96x1xf32> to vector<96x256xf32>
    %115 = arith.addf %112, %114 : vector<96x256xf32>
    %cst_54 = arith.constant 0.000000e+00 : f32
    %116 = vector.broadcast %cst_54 : f32 to vector<96x256xf32>
    %117 = arith.maximumf %115, %116 : vector<96x256xf32>
    %c0_55 = arith.constant 0 : index
    %c0_56 = arith.constant 0 : index
    %118 = vector.load %arg6[%c0_55, %c0_56] : memref<16x96xf32, #tpu.memory_space<vmem>>, vector<16x96xf32>
    %cst_57 = arith.constant dense<0.000000e+00> : vector<16x256xf32>
    %119 = tpu.matmul %118, %117, %cst_57 {dimension_numbers = #tpu.dot_dimension_numbers<[1], [0], [0], [1], [0, 0, 1, 1], [], []>} : vector<16x96xf32>, vector<96x256xf32>, vector<16x256xf32> -> vector<16x256xf32>
    %c0_58 = arith.constant 0 : index
    %c0_59 = arith.constant 0 : index
    %120 = vector.load %arg7[%c0_58, %c0_59] : memref<16x1xf32, #tpu.memory_space<vmem>>, vector<16x1xf32>
    %121 = vector.broadcast %120 : vector<16x1xf32> to vector<16x256xf32>
    %122 = arith.addf %119, %121 : vector<16x256xf32>
    %123 = arith.addf %122, %1 : vector<16x256xf32>
    %c0_60 = arith.constant 0 : index
    %c0_61 = arith.constant 0 : index
    %c0_62 = arith.constant 0 : index
    %124 = vector.load %arg8[%c0_60, %c0_61, %c0_62] : memref<1x16x256xf32, #tpu.memory_space<vmem>>, vector<1x16x256xf32>
    %125 = vector.shape_cast %124 : vector<1x16x256xf32> to vector<16x256xf32>
    %126 = vector.shape_cast %123 : vector<16x256xf32> to vector<1x16x256xf32>
    tpu.vector_store %arg8[%c0_60, %c0_61, %c0_62], %126 {strides = array<i32>} : memref<1x16x256xf32, #tpu.memory_space<vmem>>, vector<1x16x256xf32>,
    return
  }
  func.func @transform_0(%arg0: i32) -> (i32, i32, i32) {
    %c0_i32 = arith.constant 0 : i32
    %c0_i32_0 = arith.constant 0 : i32
    %c0_i32_1 = arith.constant 0 : i32
    return %arg0, %c0_i32, %c0_i32_0 : i32, i32, i32
  }
  func.func @transform_1(%arg0: i32) -> (i32, i32) {
    %c0_i32 = arith.constant 0 : i32
    %c0_i32_0 = arith.constant 0 : i32
    %c0_i32_1 = arith.constant 0 : i32
    return %c0_i32, %c0_i32_0 : i32, i32
  }
  func.func @transform_2(%arg0: i32) -> (i32, i32) {
    %c0_i32 = arith.constant 0 : i32
    %c0_i32_0 = arith.constant 0 : i32
    %c0_i32_1 = arith.constant 0 : i32
    return %c0_i32, %c0_i32_0 : i32, i32
  }
  func.func @transform_3(%arg0: i32) -> (i32, i32, i32) {
    %c0_i32 = arith.constant 0 : i32
    %c0_i32_0 = arith.constant 0 : i32
    %c0_i32_1 = arith.constant 0 : i32
    %c0_i32_2 = arith.constant 0 : i32
    return %c0_i32, %c0_i32_0, %c0_i32_1 : i32, i32, i32
  }
  func.func @transform_4(%arg0: i32) -> (i32, i32) {
    %c0_i32 = arith.constant 0 : i32
    %c0_i32_0 = arith.constant 0 : i32
    %c0_i32_1 = arith.constant 0 : i32
    return %c0_i32, %c0_i32_0 : i32, i32
  }
  func.func @transform_5(%arg0: i32) -> (i32, i32) {
    %c0_i32 = arith.constant 0 : i32
    %c0_i32_0 = arith.constant 0 : i32
    %c0_i32_1 = arith.constant 0 : i32
    return %c0_i32, %c0_i32_0 : i32, i32
  }
  func.func @transform_6(%arg0: i32) -> (i32, i32) {
    %c0_i32 = arith.constant 0 : i32
    %c0_i32_0 = arith.constant 0 : i32
    %c0_i32_1 = arith.constant 0 : i32
    return %c0_i32, %c0_i32_0 : i32, i32
  }
  func.func @transform_7(%arg0: i32) -> (i32, i32, i32) {
    %c0_i32 = arith.constant 0 : i32
    %c0_i32_0 = arith.constant 0 : i32
    %c0_i32_1 = arith.constant 0 : i32
    return %arg0, %c0_i32, %c0_i32_0 : i32, i32, i32
  }
}

</mosaic_0001>

<llo_original>
// kernel: tpu_custom_call.1
$region0: #{tpu_custom_call.1}
  #allocation0 [shape = 'u32[]', space=smem, size = 0x4, offset = 0x4, fixed_abs, tag = 'smem constant byte address 0x4 - core index']
  #allocation1 [shape = 'u32[144,128]{1,0:T(1,128)}', space=vmem, size = 0x12000, scoped, tag = 'internal scratch']
  #allocation2 [shape = 'f32[96,512]{1,0:T(8,128)}', space=vmem, size = 0x30000, scoped, tag = 'scratch operand']
  %s0 = inlined_call_operand.vmem [shape: f32[2,16,256], index: 0, kind: input, shape index: {}]
  %s1 = inlined_call_operand.vmem [shape: f32[96,16], index: 1, kind: input, shape index: {}]
  %s2 = inlined_call_operand.vmem [shape: f32[96,1], index: 2, kind: input, shape index: {}]
  %s3 = inlined_call_operand.vmem [shape: f32[9,96,1], index: 3, kind: input, shape index: {}]
  %s4 = inlined_call_operand.vmem [shape: f32[96,1], index: 4, kind: input, shape index: {}]
  %s5 = inlined_call_operand.vmem [shape: f32[16,96], index: 5, kind: input, shape index: {}]
  %s6 = inlined_call_operand.vmem [shape: f32[16,1], index: 6, kind: input, shape index: {}]
  %s7 = inlined_call_operand.hbm [shape: f32[2,16,256], index: 7, kind: output, shape index: {}]
  %s8 = sld [smem:[#allocation0]]
  $region61: #{tpu_custom_call.1} parent=0
    _
  %s10 = ssub.s32 1, %s8
  %s11 = scalar_select 0, %s10, %s8
  $region1: #{tpu_custom_call.1} parent=0
    #allocation3 [shape = 'u8[32768]{0}', space=vmem, size = 0x8000, scoped, tag = 'output window, operand 0']
    #allocation4 [shape = 's32[2]{0}', space=sflag, size = 0x8, scoped, tag = 'scoped memory for tpu_custom_call.1']
    %12 = vsyncpa [#allocation4], 0
    %s13 = scalar_lea.sflag [#allocation4], 1
    %14 = vsyncpa %s13, 0
    loop: start=0, step=1, limit=4
    $region2: #{tpu_custom_call.1} parent=1 // loop_pre_header
      _
    $region3: #{tpu_custom_call.1} parent=1 // loop_header
      %s16 = sphi 0, %s20
      %p17 = scmp.ge.s32.totalorder %s16, 4
      %s26 = sphi 0, %s28
      %s29 = sphi 0, %s26
      %s30 = sphi 0, %s29
      %s46 = sphi 0, %s30
      %s50 = sphi 0, %s50
      %s52 = sphi 0, %s50
      %s53 = sphi 0, %s52
      %s67 = sphi 0, %s53
      %s71 = sphi 0, %s71
      %s73 = sphi 0, %s71
      %s74 = sphi 0, %s73
      %s88 = sphi 0, %s74
      %s92 = sphi 0, %s92
      %s94 = sphi 0, %s92
      %s95 = sphi 0, %s94
      %s109 = sphi 0, %s95
      %s113 = sphi 0, %s113
      %s115 = sphi 0, %s113
      %s116 = sphi 0, %s115
      %s130 = sphi 0, %s116
      %s134 = sphi 0, %s134
      %s136 = sphi 0, %s134
      %s137 = sphi 0, %s136
      %s151 = sphi 0, %s137
      %s155 = sphi 0, %s155
      %s157 = sphi 0, %s155
      %s158 = sphi 0, %s157
      %s172 = sphi 0, %s158
      %s178 = sphi 0, %s180
      %s181 = sphi 0, %s178
      %s182 = sphi 0, %s181
      %s198 = sphi 0, %s182
    $region4: #{tpu_custom_call.1} parent=1 // loop_header_branch
      %19 = sbr.rel (%p17) target = $region8
    $region5: #{tpu_custom_call.1} parent=1 // loop_body
      %s21 = ssub.s32 %s16, 1
      %s22 = ssub.s32 %s16, 2
      %s23 = sadd.s32 %s16, 1
      %s24 = ssub.s32 %s16, %s23
      %p25 = scmp.eq.s32.totalorder %s24, 0
      %s27 = sadd.s32 %s26, 1
      %s28 = scalar_select %p25, %s26, %s27
      %p31 = pneg %p25
      %p32 = scmp.eq.s32.totalorder %s16, 1
      %p33 = por %p31, %p32
      %p34 = scmp.ne.s32.totalorder %s26, %s29
      %p35 = scmp.eq.s32.totalorder %s16, 0
      %p36 = por %p34, %p35
      %p37 = scmp.ne.s32.totalorder %s26, %s29
      %p38 = scmp.eq.s32.totalorder %s21, 1
      %p39 = por %p37, %p38
      %p40 = scmp.ne.s32.totalorder %s29, %s30
      %p41 = scmp.eq.s32.totalorder %s21, 0
      %p42 = por %p40, %p41
      %p43 = scmp.ne.s32.totalorder %s29, %s30
      %p44 = scmp.eq.s32.totalorder %s22, 1
      %p45 = por %p43, %p44
      %p47 = scmp.ne.s32.totalorder %s30, %s46
      %p48 = scmp.eq.s32.totalorder %s22, 0
      %p49 = por %p47, %p48
      %s51 = sadd.s32 %s50, 1
      %p54 = scmp.eq.s32.totalorder %s16, 1
      %p55 = scmp.ne.s32.totalorder %s50, %s52
      %p56 = scmp.eq.s32.totalorder %s16, 0
      %p57 = por %p55, %p56
      %p58 = scmp.ne.s32.totalorder %s50, %s52
      %p59 = scmp.eq.s32.totalorder %s21, 1
      %p60 = por %p58, %p59
      %p61 = scmp.ne.s32.totalorder %s52, %s53
      %p62 = scmp.eq.s32.totalorder %s21, 0
      %p63 = por %p61, %p62
      %p64 = scmp.ne.s32.totalorder %s52, %s53
      %p65 = scmp.eq.s32.totalorder %s22, 1
      %p66 = por %p64, %p65
      %p68 = scmp.ne.s32.totalorder %s53, %s67
      %p69 = scmp.eq.s32.totalorder %s22, 0
      %p70 = por %p68, %p69
      %s72 = sadd.s32 %s71, 1
      %p75 = scmp.eq.s32.totalorder %s16, 1
      %p76 = scmp.ne.s32.totalorder %s71, %s73
      %p77 = scmp.eq.s32.totalorder %s16, 0
      %p78 = por %p76, %p77
      %p79 = scmp.ne.s32.totalorder %s71, %s73
      %p80 = scmp.eq.s32.totalorder %s21, 1
      %p81 = por %p79, %p80
      %p82 = scmp.ne.s32.totalorder %s73, %s74
      %p83 = scmp.eq.s32.totalorder %s21, 0
      %p84 = por %p82, %p83
      %p85 = scmp.ne.s32.totalorder %s73, %s74
      %p86 = scmp.eq.s32.totalorder %s22, 1
      %p87 = por %p85, %p86
      %p89 = scmp.ne.s32.totalorder %s74, %s88
      %p90 = scmp.eq.s32.totalorder %s22, 0
      %p91 = por %p89, %p90
      %s93 = sadd.s32 %s92, 1
      %p96 = scmp.eq.s32.totalorder %s16, 1
      %p97 = scmp.ne.s32.totalorder %s92, %s94
      %p98 = scmp.eq.s32.totalorder %s16, 0
      %p99 = por %p97, %p98
      %p100 = scmp.ne.s32.totalorder %s92, %s94
      %p101 = scmp.eq.s32.totalorder %s21, 1
      %p102 = por %p100, %p101
      %p103 = scmp.ne.s32.totalorder %s94, %s95
      %p104 = scmp.eq.s32.totalorder %s21, 0
      %p105 = por %p103, %p104
      %p106 = scmp.ne.s32.totalorder %s94, %s95
      %p107 = scmp.eq.s32.totalorder %s22, 1
      %p108 = por %p106, %p107
      %p110 = scmp.ne.s32.totalorder %s95, %s109
      %p111 = scmp.eq.s32.totalorder %s22, 0
      %p112 = por %p110, %p111
      %s114 = sadd.s32 %s113, 1
      %p117 = scmp.eq.s32.totalorder %s16, 1
      %p118 = scmp.ne.s32.totalorder %s113, %s115
      %p119 = scmp.eq.s32.totalorder %s16, 0
      %p120 = por %p118, %p119
      %p121 = scmp.ne.s32.totalorder %s113, %s115
      %p122 = scmp.eq.s32.totalorder %s21, 1
      %p123 = por %p121, %p122
      %p124 = scmp.ne.s32.totalorder %s115, %s116
      %p125 = scmp.eq.s32.totalorder %s21, 0
      %p126 = por %p124, %p125
      %p127 = scmp.ne.s32.totalorder %s115, %s116
      %p128 = scmp.eq.s32.totalorder %s22, 1
      %p129 = por %p127, %p128
      %p131 = scmp.ne.s32.totalorder %s116, %s130
      %p132 = scmp.eq.s32.totalorder %s22, 0
      %p133 = por %p131, %p132
      %s135 = sadd.s32 %s134, 1
      %p138 = scmp.eq.s32.totalorder %s16, 1
      %p139 = scmp.ne.s32.totalorder %s134, %s136
      %p140 = scmp.eq.s32.totalorder %s16, 0
      %p141 = por %p139, %p140
      %p142 = scmp.ne.s32.totalorder %s134, %s136
      %p143 = scmp.eq.s32.totalorder %s21, 1
      %p144 = por %p142, %p143
      %p145 = scmp.ne.s32.totalorder %s136, %s137
      %p146 = scmp.eq.s32.totalorder %s21, 0
      %p147 = por %p145, %p146
      %p148 = scmp.ne.s32.totalorder %s136, %s137
      %p149 = scmp.eq.s32.totalorder %s22, 1
      %p150 = por %p148, %p149
      %p152 = scmp.ne.s32.totalorder %s137, %s151
      %p153 = scmp.eq.s32.totalorder %s22, 0
      %p154 = por %p152, %p153
      %s156 = sadd.s32 %s155, 1
      %p159 = scmp.eq.s32.totalorder %s16, 1
      %p160 = scmp.ne.s32.totalorder %s155, %s157
      %p161 = scmp.eq.s32.totalorder %s16, 0
      %p162 = por %p160, %p161
      %p163 = scmp.ne.s32.totalorder %s155, %s157
      %p164 = scmp.eq.s32.totalorder %s21, 1
      %p165 = por %p163, %p164
      %p166 = scmp.ne.s32.totalorder %s157, %s158
      %p167 = scmp.eq.s32.totalorder %s21, 0
      %p168 = por %p166, %p167
      %p169 = scmp.ne.s32.totalorder %s157, %s158
      %p170 = scmp.eq.s32.totalorder %s22, 1
      %p171 = por %p169, %p170
      %p173 = scmp.ne.s32.totalorder %s158, %s172
      %p174 = scmp.eq.s32.totalorder %s22, 0
      %p175 = por %p173, %p174
      %s176 = ssub.s32 %s16, %s23
      %p177 = scmp.eq.s32.totalorder %s176, 0
      %s179 = sadd.s32 %s178, 1
      %s180 = scalar_select %p177, %s178, %s179
      %p183 = pneg %p177
      %p184 = scmp.eq.s32.totalorder %s16, 1
      %p185 = por %p183, %p184
      %p186 = scmp.ne.s32.totalorder %s178, %s181
      %p187 = scmp.eq.s32.totalorder %s16, 0
      %p188 = por %p186, %p187
      %p189 = scmp.ne.s32.totalorder %s178, %s181
      %p190 = scmp.eq.s32.totalorder %s21, 1
      %p191 = por %p189, %p190
      %p192 = scmp.ne.s32.totalorder %s181, %s182
      %p193 = scmp.eq.s32.totalorder %s21, 0
      %p194 = por %p192, %p193
      %p195 = scmp.ne.s32.totalorder %s181, %s182
      %p196 = scmp.eq.s32.totalorder %s22, 1
      %p197 = por %p195, %p196
      %p199 = scmp.ne.s32.totalorder %s182, %s198
      %p200 = scmp.eq.s32.totalorder %s22, 0
      %p201 = por %p199, %p200
      %p202 = scmp.le.s32.totalorder 1, %s16
      %p203 = scmp.lt.s32.totalorder %s16, 3
      %p204 = pnand %p202, %p203
      %p205 = pneg %p204
      // Predicated region
      $region9: #{tpu_custom_call.1} parent=5 // pred_check
        _
      $region10: #{tpu_custom_call.1} parent=5 // pred_check_branch
        %207 = sbr.rel (%p204) target = $region12
      $region11: #{tpu_custom_call.1} parent=5 // pred_region
        %s208 = ssub.s32 %s16, 1
        // Predicated region
        $region13: #{tpu_custom_call.1} parent=11 // pred_check
          %p209 = pneg %p63
        $region14: #{tpu_custom_call.1} parent=11 // pred_check_branch
          %211 = sbr.rel (%p209) target = $region16
        $region15: #{tpu_custom_call.1} parent=11 // pred_region
          _
        $region16: #{tpu_custom_call.1} parent=11 // pred_fallthru
          _
        // Predicated region
        $region17: #{tpu_custom_call.1} parent=11 // pred_check
          %p212 = pneg %p84
        $region18: #{tpu_custom_call.1} parent=11 // pred_check_branch
          %214 = sbr.rel (%p212) target = $region20
        $region19: #{tpu_custom_call.1} parent=11 // pred_region
          _
        $region20: #{tpu_custom_call.1} parent=11 // pred_fallthru
          _
        // Predicated region
        $region21: #{tpu_custom_call.1} parent=11 // pred_check
          %p215 = pneg %p105
        $region22: #{tpu_custom_call.1} parent=11 // pred_check_branch
          %217 = sbr.rel (%p215) target = $region24
        $region23: #{tpu_custom_call.1} parent=11 // pred_region
          _
        $region24: #{tpu_custom_call.1} parent=11 // pred_fallthru
          _
        // Predicated region
        $region25: #{tpu_custom_call.1} parent=11 // pred_check
          %p218 = pneg %p126
        $region26: #{tpu_custom_call.1} parent=11 // pred_check_branch
          %220 = sbr.rel (%p218) target = $region28
        $region27: #{tpu_custom_call.1} parent=11 // pred_region
          _
        $region28: #{tpu_custom_call.1} parent=11 // pred_fallthru
          _
        // Predicated region
        $region29: #{tpu_custom_call.1} parent=11 // pred_check
          %p221 = pneg %p147
        $region30: #{tpu_custom_call.1} parent=11 // pred_check_branch
          %223 = sbr.rel (%p221) target = $region32
        $region31: #{tpu_custom_call.1} parent=11 // pred_region
          _
        $region32: #{tpu_custom_call.1} parent=11 // pred_fallthru
          _
        // Predicated region
        $region33: #{tpu_custom_call.1} parent=11 // pred_check
          %p224 = pneg %p168
        $region34: #{tpu_custom_call.1} parent=11 // pred_check_branch
          %226 = sbr.rel (%p224) target = $region36
        $region35: #{tpu_custom_call.1} parent=11 // pred_region
          _
        $region36: #{tpu_custom_call.1} parent=11 // pred_fallthru
          _
      $region12: #{tpu_custom_call.1} parent=5 // pred_fallthru
        _
      %p227 = scmp.lt.s32.totalorder %s16, 2
      // Predicated region
      $region37: #{tpu_custom_call.1} parent=5 // pred_check
        %p228 = pneg %p227
      $region38: #{tpu_custom_call.1} parent=5 // pred_check_branch
        %230 = sbr.rel (%p228) target = $region40
      $region39: #{tpu_custom_call.1} parent=5 // pred_region
        // Predicated region
        $region41: #{tpu_custom_call.1} parent=39 // pred_check
          %p231 = pneg %p36
        $region42: #{tpu_custom_call.1} parent=39 // pred_check_branch
          %233 = sbr.rel (%p231) target = $region44
        $region43: #{tpu_custom_call.1} parent=39 // pred_region
          %p234 = scmp.lt.s32.totalorder %s16, 1
          %s235 = scalar_select %p234, %s16, 1
          %s236 = smul.addr %s235, 4
          %s237 = smul.addr %s236, 8
          %s238 = scalar_lea.vmem %s0, %s237
        $region44: #{tpu_custom_call.1} parent=39 // pred_fallthru
          _
      $region40: #{tpu_custom_call.1} parent=5 // pred_fallthru
        _
      %p239 = scmp.le.s32.totalorder 1, %s16
      %p240 = scmp.lt.s32.totalorder %s16, 3
      %p241 = pnand %p239, %p240
      %p242 = pneg %p241
      // Predicated region
      $region45: #{tpu_custom_call.1} parent=5 // pred_check
        _
      $region46: #{tpu_custom_call.1} parent=5 // pred_check_branch
        %244 = sbr.rel (%p241) target = $region48
      $region47: #{tpu_custom_call.1} parent=5 // pred_region
        %s245 = ssub.s32 %s16, 1
        %p246 = scmp.lt.s32.totalorder %s21, 1
        %s247 = scalar_select %p246, %s21, 1
        %s248 = smul.addr %s247, 4
        %s249 = smul.addr %s248, 8
        %s250 = scalar_lea.vmem %s0, %s249
        %p251 = pneg %p42
        %p252 = pneg %p39
        %p253 = pneg %p63
        %p254 = pneg %p60
        %p255 = pneg %p84
        %p256 = pneg %p81
        %p257 = pneg %p105
        %p258 = pneg %p102
        %p259 = pneg %p126
        %p260 = pneg %p123
        %p261 = pneg %p147
        %p262 = pneg %p144
        %p263 = pneg %p168
        %p264 = pneg %p165
        %p265 = pneg %p194
        %p266 = pneg %p191
        %s267 = sand.u32 %s181, 1
        %s268 = scalar_lea.sflag [#allocation4], %s267
        %s269 = sand.u32 %s181, 1
        %s270 = smul.addr %s269, 32
        %s271 = scalar_lea.vmem [#allocation3], %s270
        %p272 = scmp.lt.s32.totalorder %s21, 1
        %s273 = scalar_select %p272, %s21, 1
        %s274 = smul.addr %s273, 4
        %s275 = smul.addr %s274, 8
        %s276 = scalar_lea.vmem %s0, %s275
        %v277 = vld [vmem:[%s276] sm:$0xff]
        %v278 = vld [vmem:[%s276 + $0x8] sm:$0xff]
        %v279 = vld [vmem:[%s276 + $0x10] sm:$0xff]
        %v280 = vld [vmem:[%s276 + $0x18] sm:$0xff]
        %v281 = vld [vmem:[%s1] sm:$0xff]
        %v282 = vld [vmem:[%s1 + $0x8] sm:$0xff]
        %v283 = vld [vmem:[%s1 + $0x10] sm:$0xff]
        %v284 = vld [vmem:[%s1 + $0x18] sm:$0xff]
        %v285 = vld [vmem:[%s1 + $0x20] sm:$0xff]
        %v286 = vld [vmem:[%s1 + $0x28] sm:$0xff]
        %v287 = vld [vmem:[%s1 + $0x30] sm:$0xff]
        %v288 = vld [vmem:[%s1 + $0x38] sm:$0xff]
        %v289 = vld [vmem:[%s1 + $0x40] sm:$0xff]
        %v290 = vld [vmem:[%s1 + $0x48] sm:$0xff]
        %v291 = vld [vmem:[%s1 + $0x50] sm:$0xff]
        %v292 = vld [vmem:[%s1 + $0x58] sm:$0xff]
        %v293 = vld [vmem:[%s2] sm:$0xff]
        %v294 = vld [vmem:[%s2 + $0x8] sm:$0xff]
        %v295 = vld [vmem:[%s2 + $0x10] sm:$0xff]
        %v296 = vld [vmem:[%s2 + $0x18] sm:$0xff]
        %v297 = vld [vmem:[%s2 + $0x20] sm:$0xff]
        %v298 = vld [vmem:[%s2 + $0x28] sm:$0xff]
        %v299 = vld [vmem:[%s2 + $0x30] sm:$0xff]
        %v300 = vld [vmem:[%s2 + $0x38] sm:$0xff]
        %v301 = vld [vmem:[%s2 + $0x40] sm:$0xff]
        %v302 = vld [vmem:[%s2 + $0x48] sm:$0xff]
        %v303 = vld [vmem:[%s2 + $0x50] sm:$0xff]
        %v304 = vld [vmem:[%s2 + $0x58] sm:$0xff]
        %306 = vset.pattern.permute.xlu0 0
        %307 = vperm.xlu0 %306, %v293
        %v308 = vpop.permute.xlu0 %307
        %311 = vset.pattern.permute.xlu0 0
        %312 = vperm.xlu0 %311, %v294
        %v313 = vpop.permute.xlu0 %312
        %316 = vset.pattern.permute.xlu0 0
        %317 = vperm.xlu0 %316, %v295
        %v318 = vpop.permute.xlu0 %317
        %321 = vset.pattern.permute.xlu0 0
        %322 = vperm.xlu0 %321, %v296
        %v323 = vpop.permute.xlu0 %322
        %326 = vset.pattern.permute.xlu0 0
        %327 = vperm.xlu0 %326, %v297
        %v328 = vpop.permute.xlu0 %327
        %331 = vset.pattern.permute.xlu0 0
        %332 = vperm.xlu0 %331, %v298
        %v333 = vpop.permute.xlu0 %332
        %336 = vset.pattern.permute.xlu0 0
        %337 = vperm.xlu0 %336, %v299
        %v338 = vpop.permute.xlu0 %337
        %341 = vset.pattern.permute.xlu0 0
        %342 = vperm.xlu0 %341, %v300
        %v343 = vpop.permute.xlu0 %342
        %346 = vset.pattern.permute.xlu0 0
        %347 = vperm.xlu0 %346, %v301
        %v348 = vpop.permute.xlu0 %347
        %351 = vset.pattern.permute.xlu0 0
        %352 = vperm.xlu0 %351, %v302
        %v353 = vpop.permute.xlu0 %352
        %356 = vset.pattern.permute.xlu0 0
        %357 = vperm.xlu0 %356, %v303
        %v358 = vpop.permute.xlu0 %357
        %361 = vset.pattern.permute.xlu0 0
        %362 = vperm.xlu0 %361, %v304
        %v363 = vpop.permute.xlu0 %362
        %vm365 = vcmask 130048
        %v367 = vsel %vm365, %v281, 0
        %v370 = vsel %vm365, %v282, 0
        %v373 = vsel %vm365, %v283, 0
        %v376 = vsel %vm365, %v284, 0
        %v379 = vsel %vm365, %v285, 0
        %v382 = vsel %vm365, %v286, 0
        %v385 = vsel %vm365, %v287, 0
        %v388 = vsel %vm365, %v288, 0
        %v391 = vsel %vm365, %v289, 0
        %v394 = vsel %vm365, %v290, 0
        %v397 = vsel %vm365, %v291, 0
        %v400 = vsel %vm365, %v292, 0
        %402 = vmatprep.subr.mxu0 %v278
        %403 = vmatpush1.msra.mxu0 %v277
        %404 = vmatprep.subr.mxu0 %v280
        %405 = vmatpush1.msra.mxu0 %v279
        %406 = vmatprep.subr.mxu0 0.0
        %407 = vmatpush1.msra.mxu0 0.0
        %408 = vmatprep.subr.mxu0 0.0
        %409 = vmatpush1.msra.mxu0 0.0
        %410 = vmatprep.subr.mxu0 0.0
        %411 = vmatpush1.msra.mxu0 0.0
        %412 = vmatprep.subr.mxu0 0.0
        %413 = vmatpush1.msra.mxu0 0.0
        %414 = vmatprep.subr.mxu0 0.0
        %415 = vmatpush1.msra.mxu0 0.0
        %416 = vmatprep.subr.mxu0 0.0
        %417 = vmatpush1.msra.mxu0 0.0
        %418 = vmatprep.subr.mxu0 0.0
        %419 = vmatpush1.msra.mxu0 0.0
        %420 = vmatprep.subr.mxu0 0.0
        %421 = vmatpush1.msra.mxu0 0.0
        %422 = vmatprep.subr.mxu0 0.0
        %423 = vmatpush1.msra.mxu0 0.0
        %424 = vmatprep.subr.mxu0 0.0
        %425 = vmatpush1.msra.mxu0 0.0
        %426 = vmatprep.subr.mxu0 0.0
        %427 = vmatpush1.msra.mxu0 0.0
        %428 = vmatprep.subr.mxu0 0.0
        %429 = vmatpush1.msra.mxu0 0.0
        %430 = vmatprep.subr.mxu0 0.0
        %431 = vmatpush1.msra.mxu0 0.0
        %432 = vmatprep.subr.mxu0 0.0
        %433 = vmatpush1.msra.mxu0 0.0
        %434 = vmatprep.subr.mxu0 0.0
        %435 = vmatpush1.msra.mxu0 0.0
        %436 = vmatprep.subr.mxu0 0.0
        %437 = vmatpush1.msra.mxu0 0.0
        %438 = vmatprep.subr.mxu0 0.0
        %439 = vmatpush1.msra.mxu0 0.0
        %440 = vmatprep.subr.mxu0 0.0
        %441 = vmatpush1.msra.mxu0 0.0
        %442 = vmatprep.subr.mxu0 0.0
        %443 = vmatpush1.msra.mxu0 0.0
        %444 = vmatprep.subr.mxu0 0.0
        %445 = vmatpush1.msra.mxu0 0.0
        %446 = vmatprep.subr.mxu0 0.0
        %447 = vmatpush1.msra.mxu0 0.0
        %448 = vmatprep.subr.mxu0 0.0
        %449 = vmatpush1.msra.mxu0 0.0
        %450 = vmatprep.subr.mxu0 0.0
        %451 = vmatpush1.msra.mxu0 0.0
        %452 = vmatprep.subr.mxu0 0.0
        %453 = vmatpush1.msra.mxu0 0.0
        %454 = vmatprep.subr.mxu0 0.0
        %455 = vmatpush1.msra.mxu0 0.0
        %456 = vmatprep.subr.mxu0 0.0
        %457 = vmatpush1.msra.mxu0 0.0
        %458 = vmatprep.subr.mxu0 0.0
        %459 = vmatpush1.msra.mxu0 0.0
        %460 = vmatprep.subr.mxu0 0.0
        %461 = vmatpush1.msra.mxu0 0.0
        %462 = vmatprep.subr.mxu0 0.0
        %463 = vmatpush1.msra.mxu0 0.0
        %464 = vmatprep.subr.mxu0 0.0
        %465 = vmatpush1.msra.mxu0 0.0
        %466 = vmatprep.mubr.f32.mxu0 0.0
        %467 = vmatmul.mubr.f32.gmra.mrb[0].mxu0 %v367
        %v468 = vpop.f32.mrb[0].mxu0
        %v469 = vadd.f32 %v308, %v468
        %v470 = vpop.f32.mrb[0].mxu0
        %v471 = vadd.f32 %v308, %v470
        %472 = vmatprep.mubr.f32.mxu0 0.0
        %473 = vmatmul.mubr.f32.gmra.mrb[0].mxu0 %v370
        %v474 = vpop.f32.mrb[0].mxu0
        %v475 = vadd.f32 %v313, %v474
        %v476 = vpop.f32.mrb[0].mxu0
        %v477 = vadd.f32 %v313, %v476
        %478 = vmatprep.mubr.f32.mxu0 0.0
        %479 = vmatmul.mubr.f32.gmra.mrb[0].mxu0 %v373
        %v480 = vpop.f32.mrb[0].mxu0
        %v481 = vadd.f32 %v318, %v480
        %v482 = vpop.f32.mrb[0].mxu0
        %v483 = vadd.f32 %v318, %v482
        %484 = vmatprep.mubr.f32.mxu0 0.0
        %485 = vmatmul.mubr.f32.gmra.mrb[0].mxu0 %v376
        %v486 = vpop.f32.mrb[0].mxu0
        %v487 = vadd.f32 %v323, %v486
        %v488 = vpop.f32.mrb[0].mxu0
        %v489 = vadd.f32 %v323, %v488
        %490 = vmatprep.mubr.f32.mxu0 0.0
        %491 = vmatmul.mubr.f32.gmra.mrb[0].mxu0 %v379
        %v492 = vpop.f32.mrb[0].mxu0
        %v493 = vadd.f32 %v328, %v492
        %v494 = vpop.f32.mrb[0].mxu0
        %v495 = vadd.f32 %v328, %v494
        %496 = vmatprep.mubr.f32.mxu0 0.0
        %497 = vmatmul.mubr.f32.gmra.mrb[0].mxu0 %v382
        %v498 = vpop.f32.mrb[0].mxu0
        %v499 = vadd.f32 %v333, %v498
        %v500 = vpop.f32.mrb[0].mxu0
        %v501 = vadd.f32 %v333, %v500
        %502 = vmatprep.mubr.f32.mxu0 0.0
        %503 = vmatmul.mubr.f32.gmra.mrb[0].mxu0 %v385
        %v504 = vpop.f32.mrb[0].mxu0
        %v505 = vadd.f32 %v338, %v504
        %v506 = vpop.f32.mrb[0].mxu0
        %v507 = vadd.f32 %v338, %v506
        %508 = vmatprep.mubr.f32.mxu0 0.0
        %509 = vmatmul.mubr.f32.gmra.mrb[0].mxu0 %v388
        %v510 = vpop.f32.mrb[0].mxu0
        %v511 = vadd.f32 %v343, %v510
        %v512 = vpop.f32.mrb[0].mxu0
        %v513 = vadd.f32 %v343, %v512
        %514 = vmatprep.mubr.f32.mxu0 0.0
        %515 = vmatmul.mubr.f32.gmra.mrb[0].mxu0 %v391
        %v516 = vpop.f32.mrb[0].mxu0
        %v517 = vadd.f32 %v348, %v516
        %v518 = vpop.f32.mrb[0].mxu0
        %v519 = vadd.f32 %v348, %v518
        %520 = vmatprep.mubr.f32.mxu0 0.0
        %521 = vmatmul.mubr.f32.gmra.mrb[0].mxu0 %v394
        %v522 = vpop.f32.mrb[0].mxu0
        %v523 = vadd.f32 %v353, %v522
        %v524 = vpop.f32.mrb[0].mxu0
        %v525 = vadd.f32 %v353, %v524
        %526 = vmatprep.mubr.f32.mxu0 0.0
        %527 = vmatmul.mubr.f32.gmra.mrb[0].mxu0 %v397
        %v528 = vpop.f32.mrb[0].mxu0
        %v529 = vadd.f32 %v358, %v528
        %v530 = vpop.f32.mrb[0].mxu0
        %v531 = vadd.f32 %v358, %v530
        %532 = vmatprep.mubr.f32.mxu0 0.0
        %533 = vmatmul.mubr.f32.gmra.mrb[0].mxu0 %v400
        %v534 = vpop.f32.mrb[0].mxu0
        %v535 = vadd.f32 %v363, %v534
        %v536 = vpop.f32.mrb[0].mxu0
        %v537 = vadd.f32 %v363, %v536
        %538 = vdwg.mxu0
        %v539 = vmax.f32 %v469, 0.0
        %v540 = vmax.f32 %v471, 0.0
        %v541 = vmax.f32 %v475, 0.0
        %v542 = vmax.f32 %v477, 0.0
        %v543 = vmax.f32 %v481, 0.0
        %v544 = vmax.f32 %v483, 0.0
        %v545 = vmax.f32 %v487, 0.0
        %v546 = vmax.f32 %v489, 0.0
        %v547 = vmax.f32 %v493, 0.0
        %v548 = vmax.f32 %v495, 0.0
        %v549 = vmax.f32 %v499, 0.0
        %v550 = vmax.f32 %v501, 0.0
        %v551 = vmax.f32 %v505, 0.0
        %v552 = vmax.f32 %v507, 0.0
        %v553 = vmax.f32 %v511, 0.0
        %v554 = vmax.f32 %v513, 0.0
        %v555 = vmax.f32 %v517, 0.0
        %v556 = vmax.f32 %v519, 0.0
        %v557 = vmax.f32 %v523, 0.0
        %v558 = vmax.f32 %v525, 0.0
        %v559 = vmax.f32 %v529, 0.0
        %v560 = vmax.f32 %v531, 0.0
        %v561 = vmax.f32 %v535, 0.0
        %v562 = vmax.f32 %v537, 0.0
        %563 = vst [vmem:[#allocation2] sm:$0xff] 0.0
        %564 = vst [vmem:[#allocation2 + $0x20] sm:$0xff] 0.0
        %565 = vst [vmem:[#allocation2 + $0x40] sm:$0xff] 0.0
        %566 = vst [vmem:[#allocation2 + $0x60] sm:$0xff] 0.0
        %567 = vst [vmem:[#allocation2 + $0x80] sm:$0xff] 0.0
        %568 = vst [vmem:[#allocation2 + $0xa0] sm:$0xff] 0.0
        %569 = vst [vmem:[#allocation2 + $0xc0] sm:$0xff] 0.0
        %570 = vst [vmem:[#allocation2 + $0xe0] sm:$0xff] 0.0
        %571 = vst [vmem:[#allocation2 + $0x100] sm:$0xff] 0.0
        %572 = vst [vmem:[#allocation2 + $0x120] sm:$0xff] 0.0
        %573 = vst [vmem:[#allocation2 + $0x140] sm:$0xff] 0.0
        %574 = vst [vmem:[#allocation2 + $0x160] sm:$0xff] 0.0
        %575 = vst [vmem:[#allocation2 + $0x18] sm:$0xff] 0.0
        %576 = vst [vmem:[#allocation2 + $0x38] sm:$0xff] 0.0
        %577 = vst [vmem:[#allocation2 + $0x58] sm:$0xff] 0.0
        %578 = vst [vmem:[#allocation2 + $0x78] sm:$0xff] 0.0
        %579 = vst [vmem:[#allocation2 + $0x98] sm:$0xff] 0.0
        %580 = vst [vmem:[#allocation2 + $0xb8] sm:$0xff] 0.0
        %581 = vst [vmem:[#allocation2 + $0xd8] sm:$0xff] 0.0
        %582 = vst [vmem:[#allocation2 + $0xf8] sm:$0xff] 0.0
        %583 = vst [vmem:[#allocation2 + $0x118] sm:$0xff] 0.0
        %584 = vst [vmem:[#allocation2 + $0x138] sm:$0xff] 0.0
        %585 = vst [vmem:[#allocation2 + $0x158] sm:$0xff] 0.0
        %586 = vst [vmem:[#allocation2 + $0x178] sm:$0xff] 0.0
        %587 = vst [vmem:[#allocation2 + $0x8] sm:$0xff] %v539
        %588 = vst [vmem:[#allocation2 + $0x10] sm:$0xff] %v540
        %589 = vst [vmem:[#allocation2 + $0x28] sm:$0xff] %v541
        %590 = vst [vmem:[#allocation2 + $0x30] sm:$0xff] %v542
        %591 = vst [vmem:[#allocation2 + $0x48] sm:$0xff] %v543
        %592 = vst [vmem:[#allocation2 + $0x50] sm:$0xff] %v544
        %593 = vst [vmem:[#allocation2 + $0x68] sm:$0xff] %v545
        %594 = vst [vmem:[#allocation2 + $0x70] sm:$0xff] %v546
        %595 = vst [vmem:[#allocation2 + $0x88] sm:$0xff] %v547
        %596 = vst [vmem:[#allocation2 + $0x90] sm:$0xff] %v548
        %597 = vst [vmem:[#allocation2 + $0xa8] sm:$0xff] %v549
        %598 = vst [vmem:[#allocation2 + $0xb0] sm:$0xff] %v550
        %599 = vst [vmem:[#allocation2 + $0xc8] sm:$0xff] %v551
        %600 = vst [vmem:[#allocation2 + $0xd0] sm:$0xff] %v552
        %601 = vst [vmem:[#allocation2 + $0xe8] sm:$0xff] %v553
        %602 = vst [vmem:[#allocation2 + $0xf0] sm:$0xff] %v554
        %603 = vst [vmem:[#allocation2 + $0x108] sm:$0xff] %v555
        %604 = vst [vmem:[#allocation2 + $0x110] sm:$0xff] %v556
        %605 = vst [vmem:[#allocation2 + $0x128] sm:$0xff] %v557
        %606 = vst [vmem:[#allocation2 + $0x130] sm:$0xff] %v558
        %607 = vst [vmem:[#allocation2 + $0x148] sm:$0xff] %v559
        %608 = vst [vmem:[#allocation2 + $0x150] sm:$0xff] %v560
        %609 = vst [vmem:[#allocation2 + $0x168] sm:$0xff] %v561
        %610 = vst [vmem:[#allocation2 + $0x170] sm:$0xff] %v562
        %v611 = vlaneseq
        %v612 = vand.u32 %v611, 127
        %v613 = vadd.s32 %v612, 128
        %v614 = vand.u32 %v612, 15
        %v615 = vand.u32 %v613, 15
        %v616 = vadd.s32 %v614, 4294967295
        %v617 = vadd.s32 %v615, 4294967295
        %vm618 = vcmp.ge.s32.totalorder %v616, 0
        %vm619 = vcmp.ge.s32.totalorder %v617, 0
        %vm620 = vcmp.lt.s32.totalorder %v616, 16
        %vm621 = vcmp.lt.s32.totalorder %v617, 16
        %vm622 = vmand %vm618, %vm620
        %vm623 = vmand %vm619, %vm621
        %v624 = vadd.s32 %v614, 1
        %v625 = vadd.s32 %v615, 1
        %vm626 = vcmp.ge.s32.totalorder %v624, 0
        %vm627 = vcmp.ge.s32.totalorder %v625, 0
        %vm628 = vcmp.lt.s32.totalorder %v624, 16
        %vm629 = vcmp.lt.s32.totalorder %v625, 16
        %vm630 = vmand %vm626, %vm628
        %vm631 = vmand %vm627, %vm629
        %v632 = vld [vmem:[#allocation2] sm:$0xff]
        %v633 = vld [vmem:[#allocation2 + $0x8] sm:$0xff]
        %v634 = vld [vmem:[#allocation2 + $0x10] sm:$0xff]
        %v635 = vld [vmem:[#allocation2 + $0x20] sm:$0xff]
        %v636 = vld [vmem:[#allocation2 + $0x28] sm:$0xff]
        %v637 = vld [vmem:[#allocation2 + $0x30] sm:$0xff]
        %v638 = vld [vmem:[#allocation2 + $0x40] sm:$0xff]
        %v639 = vld [vmem:[#allocation2 + $0x48] sm:$0xff]
        %v640 = vld [vmem:[#allocation2 + $0x50] sm:$0xff]
        %v641 = vld [vmem:[#allocation2 + $0x60] sm:$0xff]
        %v642 = vld [vmem:[#allocation2 + $0x68] sm:$0xff]
        %v643 = vld [vmem:[#allocation2 + $0x70] sm:$0xff]
        %v644 = vld [vmem:[#allocation2 + $0x80] sm:$0xff]
        %v645 = vld [vmem:[#allocation2 + $0x88] sm:$0xff]
        %v646 = vld [vmem:[#allocation2 + $0x90] sm:$0xff]
        %v647 = vld [vmem:[#allocation2 + $0xa0] sm:$0xff]
        %v648 = vld [vmem:[#allocation2 + $0xa8] sm:$0xff]
        %v649 = vld [vmem:[#allocation2 + $0xb0] sm:$0xff]
        %v650 = vld [vmem:[#allocation2 + $0xc0] sm:$0xff]
        %v651 = vld [vmem:[#allocation2 + $0xc8] sm:$0xff]
        %v652 = vld [vmem:[#allocation2 + $0xd0] sm:$0xff]
        %v653 = vld [vmem:[#allocation2 + $0xe0] sm:$0xff]
        %v654 = vld [vmem:[#allocation2 + $0xe8] sm:$0xff]
        %v655 = vld [vmem:[#allocation2 + $0xf0] sm:$0xff]
        %v656 = vld [vmem:[#allocation2 + $0x100] sm:$0xff]
        %v657 = vld [vmem:[#allocation2 + $0x108] sm:$0xff]
        %v658 = vld [vmem:[#allocation2 + $0x110] sm:$0xff]
        %v659 = vld [vmem:[#allocation2 + $0x120] sm:$0xff]
        %v660 = vld [vmem:[#allocation2 + $0x128] sm:$0xff]
        %v661 = vld [vmem:[#allocation2 + $0x130] sm:$0xff]
        %v662 = vld [vmem:[#allocation2 + $0x140] sm:$0xff]
        %v663 = vld [vmem:[#allocation2 + $0x148] sm:$0xff]
        %v664 = vld [vmem:[#allocation2 + $0x150] sm:$0xff]
        %v665 = vld [vmem:[#allocation2 + $0x160] sm:$0xff]
        %v666 = vld [vmem:[#allocation2 + $0x168] sm:$0xff]
        %v667 = vld [vmem:[#allocation2 + $0x170] sm:$0xff]
        %v668 = vsel %vm622, 1, 0
        %v669 = vsel %vm623, 1, 0
        %vm670 = vcmp.eq.s32.totalorder %v668, 1
        %vm671 = vcmp.eq.s32.totalorder %v669, 1
        %708 = vrot.lane.b32.xlu0 %v632, 17
        %v709 = vpop.permute.xlu0 %708
        %710 = vrot.lane.b32.xlu0 %v633, 17
        %v711 = vpop.permute.xlu0 %710
        %712 = vrot.lane.b32.xlu0 %v634, 17
        %v713 = vpop.permute.xlu0 %712
        %714 = vrot.lane.b32.xlu0 %v635, 17
        %v715 = vpop.permute.xlu0 %714
        %716 = vrot.lane.b32.xlu0 %v636, 17
        %v717 = vpop.permute.xlu0 %716
        %718 = vrot.lane.b32.xlu0 %v637, 17
        %v719 = vpop.permute.xlu0 %718
        %720 = vrot.lane.b32.xlu0 %v638, 17
        %v721 = vpop.permute.xlu0 %720
        %722 = vrot.lane.b32.xlu0 %v639, 17
        %v723 = vpop.permute.xlu0 %722
        %724 = vrot.lane.b32.xlu0 %v640, 17
        %v725 = vpop.permute.xlu0 %724
        %726 = vrot.lane.b32.xlu0 %v641, 17
        %v727 = vpop.permute.xlu0 %726
        %728 = vrot.lane.b32.xlu0 %v642, 17
        %v729 = vpop.permute.xlu0 %728
        %730 = vrot.lane.b32.xlu0 %v643, 17
        %v731 = vpop.permute.xlu0 %730
        %732 = vrot.lane.b32.xlu0 %v644, 17
        %v733 = vpop.permute.xlu0 %732
        %734 = vrot.lane.b32.xlu0 %v645, 17
        %v735 = vpop.permute.xlu0 %734
        %736 = vrot.lane.b32.xlu0 %v646, 17
        %v737 = vpop.permute.xlu0 %736
        %738 = vrot.lane.b32.xlu0 %v647, 17
        %v739 = vpop.permute.xlu0 %738
        %740 = vrot.lane.b32.xlu0 %v648, 17
        %v741 = vpop.permute.xlu0 %740
        %742 = vrot.lane.b32.xlu0 %v649, 17
        %v743 = vpop.permute.xlu0 %742
        %744 = vrot.lane.b32.xlu0 %v650, 17
        %v745 = vpop.permute.xlu0 %744
        %746 = vrot.lane.b32.xlu0 %v651, 17
        %v747 = vpop.permute.xlu0 %746
        %748 = vrot.lane.b32.xlu0 %v652, 17
        %v749 = vpop.permute.xlu0 %748
        %750 = vrot.lane.b32.xlu0 %v653, 17
        %v751 = vpop.permute.xlu0 %750
        %752 = vrot.lane.b32.xlu0 %v654, 17
        %v753 = vpop.permute.xlu0 %752
        %754 = vrot.lane.b32.xlu0 %v655, 17
        %v755 = vpop.permute.xlu0 %754
        %756 = vrot.lane.b32.xlu0 %v656, 17
        %v757 = vpop.permute.xlu0 %756
        %758 = vrot.lane.b32.xlu0 %v657, 17
        %v759 = vpop.permute.xlu0 %758
        %760 = vrot.lane.b32.xlu0 %v658, 17
        %v761 = vpop.permute.xlu0 %760
        %762 = vrot.lane.b32.xlu0 %v659, 17
        %v763 = vpop.permute.xlu0 %762
        %764 = vrot.lane.b32.xlu0 %v660, 17
        %v765 = vpop.permute.xlu0 %764
        %766 = vrot.lane.b32.xlu0 %v661, 17
        %v767 = vpop.permute.xlu0 %766
        %768 = vrot.lane.b32.xlu0 %v662, 17
        %v769 = vpop.permute.xlu0 %768
        %770 = vrot.lane.b32.xlu0 %v663, 17
        %v771 = vpop.permute.xlu0 %770
        %772 = vrot.lane.b32.xlu0 %v664, 17
        %v773 = vpop.permute.xlu0 %772
        %774 = vrot.lane.b32.xlu0 %v665, 17
        %v775 = vpop.permute.xlu0 %774
        %776 = vrot.lane.b32.xlu0 %v666, 17
        %v777 = vpop.permute.xlu0 %776
        %778 = vrot.lane.b32.xlu0 %v667, 17
        %v779 = vpop.permute.xlu0 %778
        %vm780 = vcmask 138240
        %v781 = vsel %vm780, %v709, %v711
        %v782 = vsel %vm780, %v711, %v713
        %v783 = vsel %vm780, %v715, %v717
        %v784 = vsel %vm780, %v717, %v719
        %v785 = vsel %vm780, %v721, %v723
        %v786 = vsel %vm780, %v723, %v725
        %v787 = vsel %vm780, %v727, %v729
        %v788 = vsel %vm780, %v729, %v731
        %v789 = vsel %vm780, %v733, %v735
        %v790 = vsel %vm780, %v735, %v737
        %v791 = vsel %vm780, %v739, %v741
        %v792 = vsel %vm780, %v741, %v743
        %v793 = vsel %vm780, %v745, %v747
        %v794 = vsel %vm780, %v747, %v749
        %v795 = vsel %vm780, %v751, %v753
        %v796 = vsel %vm780, %v753, %v755
        %v797 = vsel %vm780, %v757, %v759
        %v798 = vsel %vm780, %v759, %v761
        %v799 = vsel %vm780, %v763, %v765
        %v800 = vsel %vm780, %v765, %v767
        %v801 = vsel %vm780, %v769, %v771
        %v802 = vsel %vm780, %v771, %v773
        %v803 = vsel %vm780, %v775, %v777
        %v804 = vsel %vm780, %v777, %v779
        %v829 = vsel %vm670, %v781, 0.0
        %v830 = vsel %vm671, %v782, 0.0
        %v831 = vsel %vm670, %v783, 0.0
        %v832 = vsel %vm671, %v784, 0.0
        %v833 = vsel %vm670, %v785, 0.0
        %v834 = vsel %vm671, %v786, 0.0
        %v835 = vsel %vm670, %v787, 0.0
        %v836 = vsel %vm671, %v788, 0.0
        %v837 = vsel %vm670, %v789, 0.0
        %v838 = vsel %vm671, %v790, 0.0
        %v839 = vsel %vm670, %v791, 0.0
        %v840 = vsel %vm671, %v792, 0.0
        %v841 = vsel %vm670, %v793, 0.0
        %v842 = vsel %vm671, %v794, 0.0
        %v843 = vsel %vm670, %v795, 0.0
        %v844 = vsel %vm671, %v796, 0.0
        %v845 = vsel %vm670, %v797, 0.0
        %v846 = vsel %vm671, %v798, 0.0
        %v847 = vsel %vm670, %v799, 0.0
        %v848 = vsel %vm671, %v800, 0.0
        %v849 = vsel %vm670, %v801, 0.0
        %v850 = vsel %vm671, %v802, 0.0
        %v851 = vsel %vm670, %v803, 0.0
        %v852 = vsel %vm671, %v804, 0.0
        %v853 = vld [vmem:[%s3] sm:$0xff]
        %v854 = vld [vmem:[%s3 + $0x8] sm:$0xff]
        %v855 = vld [vmem:[%s3 + $0x10] sm:$0xff]
        %v856 = vld [vmem:[%s3 + $0x18] sm:$0xff]
        %v857 = vld [vmem:[%s3 + $0x20] sm:$0xff]
        %v858 = vld [vmem:[%s3 + $0x28] sm:$0xff]
        %v859 = vld [vmem:[%s3 + $0x30] sm:$0xff]
        %v860 = vld [vmem:[%s3 + $0x38] sm:$0xff]
        %v861 = vld [vmem:[%s3 + $0x40] sm:$0xff]
        %v862 = vld [vmem:[%s3 + $0x48] sm:$0xff]
        %v863 = vld [vmem:[%s3 + $0x50] sm:$0xff]
        %v864 = vld [vmem:[%s3 + $0x58] sm:$0xff]
        %866 = vset.pattern.permute.xlu0 0
        %867 = vperm.xlu0 %866, %v853
        %v868 = vpop.permute.xlu0 %867
        %871 = vset.pattern.permute.xlu0 0
        %872 = vperm.xlu0 %871, %v854
        %v873 = vpop.permute.xlu0 %872
        %876 = vset.pattern.permute.xlu0 0
        %877 = vperm.xlu0 %876, %v855
        %v878 = vpop.permute.xlu0 %877
        %881 = vset.pattern.permute.xlu0 0
        %882 = vperm.xlu0 %881, %v856
        %v883 = vpop.permute.xlu0 %882
        %886 = vset.pattern.permute.xlu0 0
        %887 = vperm.xlu0 %886, %v857
        %v888 = vpop.permute.xlu0 %887
        %891 = vset.pattern.permute.xlu0 0
        %892 = vperm.xlu0 %891, %v858
        %v893 = vpop.permute.xlu0 %892
        %896 = vset.pattern.permute.xlu0 0
        %897 = vperm.xlu0 %896, %v859
        %v898 = vpop.permute.xlu0 %897
        %901 = vset.pattern.permute.xlu0 0
        %902 = vperm.xlu0 %901, %v860
        %v903 = vpop.permute.xlu0 %902
        %906 = vset.pattern.permute.xlu0 0
        %907 = vperm.xlu0 %906, %v861
        %v908 = vpop.permute.xlu0 %907
        %911 = vset.pattern.permute.xlu0 0
        %912 = vperm.xlu0 %911, %v862
        %v913 = vpop.permute.xlu0 %912
        %916 = vset.pattern.permute.xlu0 0
        %917 = vperm.xlu0 %916, %v863
        %v918 = vpop.permute.xlu0 %917
        %921 = vset.pattern.permute.xlu0 0
        %922 = vperm.xlu0 %921, %v864
        %v923 = vpop.permute.xlu0 %922
        %v925 = vmul.f32 %v829, %v868
        %v926 = vmul.f32 %v830, %v868
        %v927 = vmul.f32 %v831, %v873
        %v928 = vmul.f32 %v832, %v873
        %v929 = vmul.f32 %v833, %v878
        %v930 = vmul.f32 %v834, %v878
        %v931 = vmul.f32 %v835, %v883
        %v932 = vmul.f32 %v836, %v883
        %v933 = vmul.f32 %v837, %v888
        %v934 = vmul.f32 %v838, %v888
        %v935 = vmul.f32 %v839, %v893
        %v936 = vmul.f32 %v840, %v893
        %v937 = vmul.f32 %v841, %v898
        %v938 = vmul.f32 %v842, %v898
        %v939 = vmul.f32 %v843, %v903
        %v940 = vmul.f32 %v844, %v903
        %v941 = vmul.f32 %v845, %v908
        %v942 = vmul.f32 %v846, %v908
        %v943 = vmul.f32 %v847, %v913
        %v944 = vmul.f32 %v848, %v913
        %v945 = vmul.f32 %v849, %v918
        %v946 = vmul.f32 %v850, %v918
        %v947 = vmul.f32 %v851, %v923
        %v948 = vmul.f32 %v852, %v923
        %v949 = vadd.f32 %v925, 0.0
        %v950 = vadd.f32 %v926, 0.0
        %v951 = vadd.f32 %v927, 0.0
        %v952 = vadd.f32 %v928, 0.0
        %v953 = vadd.f32 %v929, 0.0
        %v954 = vadd.f32 %v930, 0.0
        %v955 = vadd.f32 %v931, 0.0
        %v956 = vadd.f32 %v932, 0.0
        %v957 = vadd.f32 %v933, 0.0
        %v958 = vadd.f32 %v934, 0.0
        %v959 = vadd.f32 %v935, 0.0
        %v960 = vadd.f32 %v936, 0.0
        %v961 = vadd.f32 %v937, 0.0
        %v962 = vadd.f32 %v938, 0.0
        %v963 = vadd.f32 %v939, 0.0
        %v964 = vadd.f32 %v940, 0.0
        %v965 = vadd.f32 %v941, 0.0
        %v966 = vadd.f32 %v942, 0.0
        %v967 = vadd.f32 %v943, 0.0
        %v968 = vadd.f32 %v944, 0.0
        %v969 = vadd.f32 %v945, 0.0
        %v970 = vadd.f32 %v946, 0.0
        %v971 = vadd.f32 %v947, 0.0
        %v972 = vadd.f32 %v948, 0.0
        %s973 = scalar_lea.vmem %s3, 96
        %v974 = vld [vmem:[%s973] sm:$0xff]
        %v975 = vld [vmem:[%s973 + $0x8] sm:$0xff]
        %v976 = vld [vmem:[%s973 + $0x10] sm:$0xff]
        %v977 = vld [vmem:[%s973 + $0x18] sm:$0xff]
        %v978 = vld [vmem:[%s973 + $0x20] sm:$0xff]
        %v979 = vld [vmem:[%s973 + $0x28] sm:$0xff]
        %v980 = vld [vmem:[%s973 + $0x30] sm:$0xff]
        %v981 = vld [vmem:[%s973 + $0x38] sm:$0xff]
        %v982 = vld [vmem:[%s973 + $0x40] sm:$0xff]
        %v983 = vld [vmem:[%s973 + $0x48] sm:$0xff]
        %v984 = vld [vmem:[%s973 + $0x50] sm:$0xff]
        %v985 = vld [vmem:[%s973 + $0x58] sm:$0xff]
        %987 = vset.pattern.permute.xlu0 0
        %988 = vperm.xlu0 %987, %v974
        %v989 = vpop.permute.xlu0 %988
        %992 = vset.pattern.permute.xlu0 0
        %993 = vperm.xlu0 %992, %v975
        %v994 = vpop.permute.xlu0 %993
        %997 = vset.pattern.permute.xlu0 0
        %998 = vperm.xlu0 %997, %v976
        %v999 = vpop.permute.xlu0 %998
        %1002 = vset.pattern.permute.xlu0 0
        %1003 = vperm.xlu0 %1002, %v977
        %v1004 = vpop.permute.xlu0 %1003
        %1007 = vset.pattern.permute.xlu0 0
        %1008 = vperm.xlu0 %1007, %v978
        %v1009 = vpop.permute.xlu0 %1008
        %1012 = vset.pattern.permute.xlu0 0
        %1013 = vperm.xlu0 %1012, %v979
        %v1014 = vpop.permute.xlu0 %1013
        %1017 = vset.pattern.permute.xlu0 0
        %1018 = vperm.xlu0 %1017, %v980
        %v1019 = vpop.permute.xlu0 %1018
        %1022 = vset.pattern.permute.xlu0 0
        %1023 = vperm.xlu0 %1022, %v981
        %v1024 = vpop.permute.xlu0 %1023
        %1027 = vset.pattern.permute.xlu0 0
        %1028 = vperm.xlu0 %1027, %v982
        %v1029 = vpop.permute.xlu0 %1028
        %1032 = vset.pattern.permute.xlu0 0
        %1033 = vperm.xlu0 %1032, %v983
        %v1034 = vpop.permute.xlu0 %1033
        %1037 = vset.pattern.permute.xlu0 0
        %1038 = vperm.xlu0 %1037, %v984
        %v1039 = vpop.permute.xlu0 %1038
        %1042 = vset.pattern.permute.xlu0 0
        %1043 = vperm.xlu0 %1042, %v985
        %v1044 = vpop.permute.xlu0 %1043
        %v1046 = vmul.f32 %v632, %v989
        %v1047 = vmul.f32 %v633, %v989
        %v1048 = vmul.f32 %v634, %v989
        %v1049 = vmul.f32 %v635, %v994
        %v1050 = vmul.f32 %v636, %v994
        %v1051 = vmul.f32 %v637, %v994
        %v1052 = vmul.f32 %v638, %v999
        %v1053 = vmul.f32 %v639, %v999
        %v1054 = vmul.f32 %v640, %v999
        %v1055 = vmul.f32 %v641, %v1004
        %v1056 = vmul.f32 %v642, %v1004
        %v1057 = vmul.f32 %v643, %v1004
        %v1058 = vmul.f32 %v644, %v1009
        %v1059 = vmul.f32 %v645, %v1009
        %v1060 = vmul.f32 %v646, %v1009
        %v1061 = vmul.f32 %v647, %v1014
        %v1062 = vmul.f32 %v648, %v1014
        %v1063 = vmul.f32 %v649, %v1014
        %v1064 = vmul.f32 %v650, %v1019
        %v1065 = vmul.f32 %v651, %v1019
        %v1066 = vmul.f32 %v652, %v1019
        %v1067 = vmul.f32 %v653, %v1024
        %v1068 = vmul.f32 %v654, %v1024
        %v1069 = vmul.f32 %v655, %v1024
        %v1070 = vmul.f32 %v656, %v1029
        %v1071 = vmul.f32 %v657, %v1029
        %v1072 = vmul.f32 %v658, %v1029
        %v1073 = vmul.f32 %v659, %v1034
        %v1074 = vmul.f32 %v660, %v1034
        %v1075 = vmul.f32 %v661, %v1034
        %v1076 = vmul.f32 %v662, %v1039
        %v1077 = vmul.f32 %v663, %v1039
        %v1078 = vmul.f32 %v664, %v1039
        %v1079 = vmul.f32 %v665, %v1044
        %v1080 = vmul.f32 %v666, %v1044
        %v1081 = vmul.f32 %v667, %v1044
        %1118 = vrot.lane.b32.xlu0 %v1046, 16
        %v1119 = vpop.permute.xlu0 %1118
        %1120 = vrot.lane.b32.xlu0 %v1047, 16
        %v1121 = vpop.permute.xlu0 %1120
        %1122 = vrot.lane.b32.xlu0 %v1048, 16
        %v1123 = vpop.permute.xlu0 %1122
        %1124 = vrot.lane.b32.xlu0 %v1049, 16
        %v1125 = vpop.permute.xlu0 %1124
        %1126 = vrot.lane.b32.xlu0 %v1050, 16
        %v1127 = vpop.permute.xlu0 %1126
        %1128 = vrot.lane.b32.xlu0 %v1051, 16
        %v1129 = vpop.permute.xlu0 %1128
        %1130 = vrot.lane.b32.xlu0 %v1052, 16
        %v1131 = vpop.permute.xlu0 %1130
        %1132 = vrot.lane.b32.xlu0 %v1053, 16
        %v1133 = vpop.permute.xlu0 %1132
        %1134 = vrot.lane.b32.xlu0 %v1054, 16
        %v1135 = vpop.permute.xlu0 %1134
        %1136 = vrot.lane.b32.xlu0 %v1055, 16
        %v1137 = vpop.permute.xlu0 %1136
        %1138 = vrot.lane.b32.xlu0 %v1056, 16
        %v1139 = vpop.permute.xlu0 %1138
        %1140 = vrot.lane.b32.xlu0 %v1057, 16
        %v1141 = vpop.permute.xlu0 %1140
        %1142 = vrot.lane.b32.xlu0 %v1058, 16
        %v1143 = vpop.permute.xlu0 %1142
        %1144 = vrot.lane.b32.xlu0 %v1059, 16
        %v1145 = vpop.permute.xlu0 %1144
        %1146 = vrot.lane.b32.xlu0 %v1060, 16
        %v1147 = vpop.permute.xlu0 %1146
        %1148 = vrot.lane.b32.xlu0 %v1061, 16
        %v1149 = vpop.permute.xlu0 %1148
        %1150 = vrot.lane.b32.xlu0 %v1062, 16
        %v1151 = vpop.permute.xlu0 %1150
        %1152 = vrot.lane.b32.xlu0 %v1063, 16
        %v1153 = vpop.permute.xlu0 %1152
        %1154 = vrot.lane.b32.xlu0 %v1064, 16
        %v1155 = vpop.permute.xlu0 %1154
        %1156 = vrot.lane.b32.xlu0 %v1065, 16
        %v1157 = vpop.permute.xlu0 %1156
        %1158 = vrot.lane.b32.xlu0 %v1066, 16
        %v1159 = vpop.permute.xlu0 %1158
        %1160 = vrot.lane.b32.xlu0 %v1067, 16
        %v1161 = vpop.permute.xlu0 %1160
        %1162 = vrot.lane.b32.xlu0 %v1068, 16
        %v1163 = vpop.permute.xlu0 %1162
        %1164 = vrot.lane.b32.xlu0 %v1069, 16
        %v1165 = vpop.permute.xlu0 %1164
        %1166 = vrot.lane.b32.xlu0 %v1070, 16
        %v1167 = vpop.permute.xlu0 %1166
        %1168 = vrot.lane.b32.xlu0 %v1071, 16
        %v1169 = vpop.permute.xlu0 %1168
        %1170 = vrot.lane.b32.xlu0 %v1072, 16
        %v1171 = vpop.permute.xlu0 %1170
        %1172 = vrot.lane.b32.xlu0 %v1073, 16
        %v1173 = vpop.permute.xlu0 %1172
        %1174 = vrot.lane.b32.xlu0 %v1074, 16
        %v1175 = vpop.permute.xlu0 %1174
        %1176 = vrot.lane.b32.xlu0 %v1075, 16
        %v1177 = vpop.permute.xlu0 %1176
        %1178 = vrot.lane.b32.xlu0 %v1076, 16
        %v1179 = vpop.permute.xlu0 %1178
        %1180 = vrot.lane.b32.xlu0 %v1077, 16
        %v1181 = vpop.permute.xlu0 %1180
        %1182 = vrot.lane.b32.xlu0 %v1078, 16
        %v1183 = vpop.permute.xlu0 %1182
        %1184 = vrot.lane.b32.xlu0 %v1079, 16
        %v1185 = vpop.permute.xlu0 %1184
        %1186 = vrot.lane.b32.xlu0 %v1080, 16
        %v1187 = vpop.permute.xlu0 %1186
        %1188 = vrot.lane.b32.xlu0 %v1081, 16
        %v1189 = vpop.permute.xlu0 %1188
        %v1190 = vsel %vm365, %v1119, %v1121
        %v1191 = vsel %vm365, %v1121, %v1123
        %v1192 = vsel %vm365, %v1125, %v1127
        %v1193 = vsel %vm365, %v1127, %v1129
        %v1194 = vsel %vm365, %v1131, %v1133
        %v1195 = vsel %vm365, %v1133, %v1135
        %v1196 = vsel %vm365, %v1137, %v1139
        %v1197 = vsel %vm365, %v1139, %v1141
        %v1198 = vsel %vm365, %v1143, %v1145
        %v1199 = vsel %vm365, %v1145, %v1147
        %v1200 = vsel %vm365, %v1149, %v1151
        %v1201 = vsel %vm365, %v1151, %v1153
        %v1202 = vsel %vm365, %v1155, %v1157
        %v1203 = vsel %vm365, %v1157, %v1159
        %v1204 = vsel %vm365, %v1161, %v1163
        %v1205 = vsel %vm365, %v1163, %v1165
        %v1206 = vsel %vm365, %v1167, %v1169
        %v1207 = vsel %vm365, %v1169, %v1171
        %v1208 = vsel %vm365, %v1173, %v1175
        %v1209 = vsel %vm365, %v1175, %v1177
        %v1210 = vsel %vm365, %v1179, %v1181
        %v1211 = vsel %vm365, %v1181, %v1183
        %v1212 = vsel %vm365, %v1185, %v1187
        %v1213 = vsel %vm365, %v1187, %v1189
        %v1238 = vadd.f32 %v949, %v1190
        %v1239 = vadd.f32 %v950, %v1191
        %v1240 = vadd.f32 %v951, %v1192
        %v1241 = vadd.f32 %v952, %v1193
        %v1242 = vadd.f32 %v953, %v1194
        %v1243 = vadd.f32 %v954, %v1195
        %v1244 = vadd.f32 %v955, %v1196
        %v1245 = vadd.f32 %v956, %v1197
        %v1246 = vadd.f32 %v957, %v1198
        %v1247 = vadd.f32 %v958, %v1199
        %v1248 = vadd.f32 %v959, %v1200
        %v1249 = vadd.f32 %v960, %v1201
        %v1250 = vadd.f32 %v961, %v1202
        %v1251 = vadd.f32 %v962, %v1203
        %v1252 = vadd.f32 %v963, %v1204
        %v1253 = vadd.f32 %v964, %v1205
        %v1254 = vadd.f32 %v965, %v1206
        %v1255 = vadd.f32 %v966, %v1207
        %v1256 = vadd.f32 %v967, %v1208
        %v1257 = vadd.f32 %v968, %v1209
        %v1258 = vadd.f32 %v969, %v1210
        %v1259 = vadd.f32 %v970, %v1211
        %v1260 = vadd.f32 %v971, %v1212
        %v1261 = vadd.f32 %v972, %v1213
        %v1262 = vsel %vm630, 1, 0
        %v1263 = vsel %vm631, 1, 0
        %vm1264 = vcmp.eq.s32.totalorder %v1262, 1
        %vm1265 = vcmp.eq.s32.totalorder %v1263, 1
        %1266 = vrot.lane.b32.xlu0 %v632, 15
        %v1267 = vpop.permute.xlu0 %1266
        %1268 = vrot.lane.b32.xlu0 %v633, 15
        %v1269 = vpop.permute.xlu0 %1268
        %1270 = vrot.lane.b32.xlu0 %v634, 15
        %v1271 = vpop.permute.xlu0 %1270
        %1272 = vrot.lane.b32.xlu0 %v635, 15
        %v1273 = vpop.permute.xlu0 %1272
        %1274 = vrot.lane.b32.xlu0 %v636, 15
        %v1275 = vpop.permute.xlu0 %1274
        %1276 = vrot.lane.b32.xlu0 %v637, 15
        %v1277 = vpop.permute.xlu0 %1276
        %1278 = vrot.lane.b32.xlu0 %v638, 15
        %v1279 = vpop.permute.xlu0 %1278
        %1280 = vrot.lane.b32.xlu0 %v639, 15
        %v1281 = vpop.permute.xlu0 %1280
        %1282 = vrot.lane.b32.xlu0 %v640, 15
        %v1283 = vpop.permute.xlu0 %1282
        %1284 = vrot.lane.b32.xlu0 %v641, 15
        %v1285 = vpop.permute.xlu0 %1284
        %1286 = vrot.lane.b32.xlu0 %v642, 15
        %v1287 = vpop.permute.xlu0 %1286
        %1288 = vrot.lane.b32.xlu0 %v643, 15
        %v1289 = vpop.permute.xlu0 %1288
        %1290 = vrot.lane.b32.xlu0 %v644, 15
        %v1291 = vpop.permute.xlu0 %1290
        %1292 = vrot.lane.b32.xlu0 %v645, 15
        %v1293 = vpop.permute.xlu0 %1292
        %1294 = vrot.lane.b32.xlu0 %v646, 15
        %v1295 = vpop.permute.xlu0 %1294
        %1296 = vrot.lane.b32.xlu0 %v647, 15
        %v1297 = vpop.permute.xlu0 %1296
        %1298 = vrot.lane.b32.xlu0 %v648, 15
        %v1299 = vpop.permute.xlu0 %1298
        %1300 = vrot.lane.b32.xlu0 %v649, 15
        %v1301 = vpop.permute.xlu0 %1300
        %1302 = vrot.lane.b32.xlu0 %v650, 15
        %v1303 = vpop.permute.xlu0 %1302
        %1304 = vrot.lane.b32.xlu0 %v651, 15
        %v1305 = vpop.permute.xlu0 %1304
        %1306 = vrot.lane.b32.xlu0 %v652, 15
        %v1307 = vpop.permute.xlu0 %1306
        %1308 = vrot.lane.b32.xlu0 %v653, 15
        %v1309 = vpop.permute.xlu0 %1308
        %1310 = vrot.lane.b32.xlu0 %v654, 15
        %v1311 = vpop.permute.xlu0 %1310
        %1312 = vrot.lane.b32.xlu0 %v655, 15
        %v1313 = vpop.permute.xlu0 %1312
        %1314 = vrot.lane.b32.xlu0 %v656, 15
        %v1315 = vpop.permute.xlu0 %1314
        %1316 = vrot.lane.b32.xlu0 %v657, 15
        %v1317 = vpop.permute.xlu0 %1316
        %1318 = vrot.lane.b32.xlu0 %v658, 15
        %v1319 = vpop.permute.xlu0 %1318
        %1320 = vrot.lane.b32.xlu0 %v659, 15
        %v1321 = vpop.permute.xlu0 %1320
        %1322 = vrot.lane.b32.xlu0 %v660, 15
        %v1323 = vpop.permute.xlu0 %1322
        %1324 = vrot.lane.b32.xlu0 %v661, 15
        %v1325 = vpop.permute.xlu0 %1324
        %1326 = vrot.lane.b32.xlu0 %v662, 15
        %v1327 = vpop.permute.xlu0 %1326
        %1328 = vrot.lane.b32.xlu0 %v663, 15
        %v1329 = vpop.permute.xlu0 %1328
        %1330 = vrot.lane.b32.xlu0 %v664, 15
        %v1331 = vpop.permute.xlu0 %1330
        %1332 = vrot.lane.b32.xlu0 %v665, 15
        %v1333 = vpop.permute.xlu0 %1332
        %1334 = vrot.lane.b32.xlu0 %v666, 15
        %v1335 = vpop.permute.xlu0 %1334
        %1336 = vrot.lane.b32.xlu0 %v667, 15
        %v1337 = vpop.permute.xlu0 %1336
        %vm1338 = vcmask 121856
        %v1339 = vsel %vm1338, %v1267, %v1269
        %v1340 = vsel %vm1338, %v1269, %v1271
        %v1341 = vsel %vm1338, %v1273, %v1275
        %v1342 = vsel %vm1338, %v1275, %v1277
        %v1343 = vsel %vm1338, %v1279, %v1281
        %v1344 = vsel %vm1338, %v1281, %v1283
        %v1345 = vsel %vm1338, %v1285, %v1287
        %v1346 = vsel %vm1338, %v1287, %v1289
        %v1347 = vsel %vm1338, %v1291, %v1293
        %v1348 = vsel %vm1338, %v1293, %v1295
        %v1349 = vsel %vm1338, %v1297, %v1299
        %v1350 = vsel %vm1338, %v1299, %v1301
        %v1351 = vsel %vm1338, %v1303, %v1305
        %v1352 = vsel %vm1338, %v1305, %v1307
        %v1353 = vsel %vm1338, %v1309, %v1311
        %v1354 = vsel %vm1338, %v1311, %v1313
        %v1355 = vsel %vm1338, %v1315, %v1317
        %v1356 = vsel %vm1338, %v1317, %v1319
        %v1357 = vsel %vm1338, %v1321, %v1323
        %v1358 = vsel %vm1338, %v1323, %v1325
        %v1359 = vsel %vm1338, %v1327, %v1329
        %v1360 = vsel %vm1338, %v1329, %v1331
        %v1361 = vsel %vm1338, %v1333, %v1335
        %v1362 = vsel %vm1338, %v1335, %v1337
        %v1387 = vsel %vm1264, %v1339, 0.0
        %v1388 = vsel %vm1265, %v1340, 0.0
        %v1389 = vsel %vm1264, %v1341, 0.0
        %v1390 = vsel %vm1265, %v1342, 0.0
        %v1391 = vsel %vm1264, %v1343, 0.0
        %v1392 = vsel %vm1265, %v1344, 0.0
        %v1393 = vsel %vm1264, %v1345, 0.0
        %v1394 = vsel %vm1265, %v1346, 0.0
        %v1395 = vsel %vm1264, %v1347, 0.0
        %v1396 = vsel %vm1265, %v1348, 0.0
        %v1397 = vsel %vm1264, %v1349, 0.0
        %v1398 = vsel %vm1265, %v1350, 0.0
        %v1399 = vsel %vm1264, %v1351, 0.0
        %v1400 = vsel %vm1265, %v1352, 0.0
        %v1401 = vsel %vm1264, %v1353, 0.0
        %v1402 = vsel %vm1265, %v1354, 0.0
        %v1403 = vsel %vm1264, %v1355, 0.0
        %v1404 = vsel %vm1265, %v1356, 0.0
        %v1405 = vsel %vm1264, %v1357, 0.0
        %v1406 = vsel %vm1265, %v1358, 0.0
        %v1407 = vsel %vm1264, %v1359, 0.0
        %v1408 = vsel %vm1265, %v1360, 0.0
        %v1409 = vsel %vm1264, %v1361, 0.0
        %v1410 = vsel %vm1265, %v1362, 0.0
        %s1411 = scalar_lea.vmem %s3, 192
        %v1412 = vld [vmem:[%s1411] sm:$0xff]
        %v1413 = vld [vmem:[%s1411 + $0x8] sm:$0xff]
        %v1414 = vld [vmem:[%s1411 + $0x10] sm:$0xff]
        %v1415 = vld [vmem:[%s1411 + $0x18] sm:$0xff]
        %v1416 = vld [vmem:[%s1411 + $0x20] sm:$0xff]
        %v1417 = vld [vmem:[%s1411 + $0x28] sm:$0xff]
        %v1418 = vld [vmem:[%s1411 + $0x30] sm:$0xff]
        %v1419 = vld [vmem:[%s1411 + $0x38] sm:$0xff]
        %v1420 = vld [vmem:[%s1411 + $0x40] sm:$0xff]
        %v1421 = vld [vmem:[%s1411 + $0x48] sm:$0xff]
        %v1422 = vld [vmem:[%s1411 + $0x50] sm:$0xff]
        %v1423 = vld [vmem:[%s1411 + $0x58] sm:$0xff]
        %1425 = vset.pattern.permute.xlu0 0
        %1426 = vperm.xlu0 %1425, %v1412
        %v1427 = vpop.permute.xlu0 %1426
        %1430 = vset.pattern.permute.xlu0 0
        %1431 = vperm.xlu0 %1430, %v1413
        %v1432 = vpop.permute.xlu0 %1431
        %1435 = vset.pattern.permute.xlu0 0
        %1436 = vperm.xlu0 %1435, %v1414
        %v1437 = vpop.permute.xlu0 %1436
        %1440 = vset.pattern.permute.xlu0 0
        %1441 = vperm.xlu0 %1440, %v1415
        %v1442 = vpop.permute.xlu0 %1441
        %1445 = vset.pattern.permute.xlu0 0
        %1446 = vperm.xlu0 %1445, %v1416
        %v1447 = vpop.permute.xlu0 %1446
        %1450 = vset.pattern.permute.xlu0 0
        %1451 = vperm.xlu0 %1450, %v1417
        %v1452 = vpop.permute.xlu0 %1451
        %1455 = vset.pattern.permute.xlu0 0
        %1456 = vperm.xlu0 %1455, %v1418
        %v1457 = vpop.permute.xlu0 %1456
        %1460 = vset.pattern.permute.xlu0 0
        %1461 = vperm.xlu0 %1460, %v1419
        %v1462 = vpop.permute.xlu0 %1461
        %1465 = vset.pattern.permute.xlu0 0
        %1466 = vperm.xlu0 %1465, %v1420
        %v1467 = vpop.permute.xlu0 %1466
        %1470 = vset.pattern.permute.xlu0 0
        %1471 = vperm.xlu0 %1470, %v1421
        %v1472 = vpop.permute.xlu0 %1471
        %1475 = vset.pattern.permute.xlu0 0
        %1476 = vperm.xlu0 %1475, %v1422
        %v1477 = vpop.permute.xlu0 %1476
        %1480 = vset.pattern.permute.xlu0 0
        %1481 = vperm.xlu0 %1480, %v1423
        %v1482 = vpop.permute.xlu0 %1481
        %v1484 = vmul.f32 %v1387, %v1427
        %v1485 = vmul.f32 %v1388, %v1427
        %v1486 = vmul.f32 %v1389, %v1432
        %v1487 = vmul.f32 %v1390, %v1432
        %v1488 = vmul.f32 %v1391, %v1437
        %v1489 = vmul.f32 %v1392, %v1437
        %v1490 = vmul.f32 %v1393, %v1442
        %v1491 = vmul.f32 %v1394, %v1442
        %v1492 = vmul.f32 %v1395, %v1447
        %v1493 = vmul.f32 %v1396, %v1447
        %v1494 = vmul.f32 %v1397, %v1452
        %v1495 = vmul.f32 %v1398, %v1452
        %v1496 = vmul.f32 %v1399, %v1457
        %v1497 = vmul.f32 %v1400, %v1457
        %v1498 = vmul.f32 %v1401, %v1462
        %v1499 = vmul.f32 %v1402, %v1462
        %v1500 = vmul.f32 %v1403, %v1467
        %v1501 = vmul.f32 %v1404, %v1467
        %v1502 = vmul.f32 %v1405, %v1472
        %v1503 = vmul.f32 %v1406, %v1472
        %v1504 = vmul.f32 %v1407, %v1477
        %v1505 = vmul.f32 %v1408, %v1477
        %v1506 = vmul.f32 %v1409, %v1482
        %v1507 = vmul.f32 %v1410, %v1482
        %v1508 = vadd.f32 %v1238, %v1484
        %v1509 = vadd.f32 %v1239, %v1485
        %v1510 = vadd.f32 %v1240, %v1486
        %v1511 = vadd.f32 %v1241, %v1487
        %v1512 = vadd.f32 %v1242, %v1488
        %v1513 = vadd.f32 %v1243, %v1489
        %v1514 = vadd.f32 %v1244, %v1490
        %v1515 = vadd.f32 %v1245, %v1491
        %v1516 = vadd.f32 %v1246, %v1492
        %v1517 = vadd.f32 %v1247, %v1493
        %v1518 = vadd.f32 %v1248, %v1494
        %v1519 = vadd.f32 %v1249, %v1495
        %v1520 = vadd.f32 %v1250, %v1496
        %v1521 = vadd.f32 %v1251, %v1497
        %v1522 = vadd.f32 %v1252, %v1498
        %v1523 = vadd.f32 %v1253, %v1499
        %v1524 = vadd.f32 %v1254, %v1500
        %v1525 = vadd.f32 %v1255, %v1501
        %v1526 = vadd.f32 %v1256, %v1502
        %v1527 = vadd.f32 %v1257, %v1503
        %v1528 = vadd.f32 %v1258, %v1504
        %v1529 = vadd.f32 %v1259, %v1505
        %v1530 = vadd.f32 %v1260, %v1506
        %v1531 = vadd.f32 %v1261, %v1507
        %1532 = vrot.lane.b32.xlu0 %v632, 1
        %v1533 = vpop.permute.xlu0 %1532
        %1534 = vrot.lane.b32.xlu0 %v633, 1
        %v1535 = vpop.permute.xlu0 %1534
        %1536 = vrot.lane.b32.xlu0 %v634, 1
        %v1537 = vpop.permute.xlu0 %1536
        %1538 = vrot.lane.b32.xlu0 %v635, 1
        %v1539 = vpop.permute.xlu0 %1538
        %1540 = vrot.lane.b32.xlu0 %v636, 1
        %v1541 = vpop.permute.xlu0 %1540
        %1542 = vrot.lane.b32.xlu0 %v637, 1
        %v1543 = vpop.permute.xlu0 %1542
        %1544 = vrot.lane.b32.xlu0 %v638, 1
        %v1545 = vpop.permute.xlu0 %1544
        %1546 = vrot.lane.b32.xlu0 %v639, 1
        %v1547 = vpop.permute.xlu0 %1546
        %1548 = vrot.lane.b32.xlu0 %v640, 1
        %v1549 = vpop.permute.xlu0 %1548
        %1550 = vrot.lane.b32.xlu0 %v641, 1
        %v1551 = vpop.permute.xlu0 %1550
        %1552 = vrot.lane.b32.xlu0 %v642, 1
        %v1553 = vpop.permute.xlu0 %1552
        %1554 = vrot.lane.b32.xlu0 %v643, 1
        %v1555 = vpop.permute.xlu0 %1554
        %1556 = vrot.lane.b32.xlu0 %v644, 1
        %v1557 = vpop.permute.xlu0 %1556
        %1558 = vrot.lane.b32.xlu0 %v645, 1
        %v1559 = vpop.permute.xlu0 %1558
        %1560 = vrot.lane.b32.xlu0 %v646, 1
        %v1561 = vpop.permute.xlu0 %1560
        %1562 = vrot.lane.b32.xlu0 %v647, 1
        %v1563 = vpop.permute.xlu0 %1562
        %1564 = vrot.lane.b32.xlu0 %v648, 1
        %v1565 = vpop.permute.xlu0 %1564
        %1566 = vrot.lane.b32.xlu0 %v649, 1
        %v1567 = vpop.permute.xlu0 %1566
        %1568 = vrot.lane.b32.xlu0 %v650, 1
        %v1569 = vpop.permute.xlu0 %1568
        %1570 = vrot.lane.b32.xlu0 %v651, 1
        %v1571 = vpop.permute.xlu0 %1570
        %1572 = vrot.lane.b32.xlu0 %v652, 1
        %v1573 = vpop.permute.xlu0 %1572
        %1574 = vrot.lane.b32.xlu0 %v653, 1
        %v1575 = vpop.permute.xlu0 %1574
        %1576 = vrot.lane.b32.xlu0 %v654, 1
        %v1577 = vpop.permute.xlu0 %1576
        %1578 = vrot.lane.b32.xlu0 %v655, 1
        %v1579 = vpop.permute.xlu0 %1578
        %1580 = vrot.lane.b32.xlu0 %v656, 1
        %v1581 = vpop.permute.xlu0 %1580
        %1582 = vrot.lane.b32.xlu0 %v657, 1
        %v1583 = vpop.permute.xlu0 %1582
        %1584 = vrot.lane.b32.xlu0 %v658, 1
        %v1585 = vpop.permute.xlu0 %1584
        %1586 = vrot.lane.b32.xlu0 %v659, 1
        %v1587 = vpop.permute.xlu0 %1586
        %1588 = vrot.lane.b32.xlu0 %v660, 1
        %v1589 = vpop.permute.xlu0 %1588
        %1590 = vrot.lane.b32.xlu0 %v661, 1
        %v1591 = vpop.permute.xlu0 %1590
        %1592 = vrot.lane.b32.xlu0 %v662, 1
        %v1593 = vpop.permute.xlu0 %1592
        %1594 = vrot.lane.b32.xlu0 %v663, 1
        %v1595 = vpop.permute.xlu0 %1594
        %1596 = vrot.lane.b32.xlu0 %v664, 1
        %v1597 = vpop.permute.xlu0 %1596
        %1598 = vrot.lane.b32.xlu0 %v665, 1
        %v1599 = vpop.permute.xlu0 %1598
        %1600 = vrot.lane.b32.xlu0 %v666, 1
        %v1601 = vpop.permute.xlu0 %1600
        %1602 = vrot.lane.b32.xlu0 %v667, 1
        %v1603 = vpop.permute.xlu0 %1602
        %vm1604 = vcmask 7168
        %v1605 = vsel %vm1604, %v1533, %v1535
        %v1606 = vsel %vm1604, %v1535, %v1537
        %v1607 = vsel %vm1604, %v1539, %v1541
        %v1608 = vsel %vm1604, %v1541, %v1543
        %v1609 = vsel %vm1604, %v1545, %v1547
        %v1610 = vsel %vm1604, %v1547, %v1549
        %v1611 = vsel %vm1604, %v1551, %v1553
        %v1612 = vsel %vm1604, %v1553, %v1555
        %v1613 = vsel %vm1604, %v1557, %v1559
        %v1614 = vsel %vm1604, %v1559, %v1561
        %v1615 = vsel %vm1604, %v1563, %v1565
        %v1616 = vsel %vm1604, %v1565, %v1567
        %v1617 = vsel %vm1604, %v1569, %v1571
        %v1618 = vsel %vm1604, %v1571, %v1573
        %v1619 = vsel %vm1604, %v1575, %v1577
        %v1620 = vsel %vm1604, %v1577, %v1579
        %v1621 = vsel %vm1604, %v1581, %v1583
        %v1622 = vsel %vm1604, %v1583, %v1585
        %v1623 = vsel %vm1604, %v1587, %v1589
        %v1624 = vsel %vm1604, %v1589, %v1591
        %v1625 = vsel %vm1604, %v1593, %v1595
        %v1626 = vsel %vm1604, %v1595, %v1597
        %v1627 = vsel %vm1604, %v1599, %v1601
        %v1628 = vsel %vm1604, %v1601, %v1603
        %v1653 = vsel %vm670, %v1605, 0.0
        %v1654 = vsel %vm671, %v1606, 0.0
        %v1655 = vsel %vm670, %v1607, 0.0
        %v1656 = vsel %vm671, %v1608, 0.0
        %v1657 = vsel %vm670, %v1609, 0.0
        %v1658 = vsel %vm671, %v1610, 0.0
        %v1659 = vsel %vm670, %v1611, 0.0
        %v1660 = vsel %vm671, %v1612, 0.0
        %v1661 = vsel %vm670, %v1613, 0.0
        %v1662 = vsel %vm671, %v1614, 0.0
        %v1663 = vsel %vm670, %v1615, 0.0
        %v1664 = vsel %vm671, %v1616, 0.0
        %v1665 = vsel %vm670, %v1617, 0.0
        %v1666 = vsel %vm671, %v1618, 0.0
        %v1667 = vsel %vm670, %v1619, 0.0
        %v1668 = vsel %vm671, %v1620, 0.0
        %v1669 = vsel %vm670, %v1621, 0.0
        %v1670 = vsel %vm671, %v1622, 0.0
        %v1671 = vsel %vm670, %v1623, 0.0
        %v1672 = vsel %vm671, %v1624, 0.0
        %v1673 = vsel %vm670, %v1625, 0.0
        %v1674 = vsel %vm671, %v1626, 0.0
        %v1675 = vsel %vm670, %v1627, 0.0
        %v1676 = vsel %vm671, %v1628, 0.0
        %s1677 = scalar_lea.vmem %s3, 288
        %v1678 = vld [vmem:[%s1677] sm:$0xff]
        %v1679 = vld [vmem:[%s1677 + $0x8] sm:$0xff]
        %v1680 = vld [vmem:[%s1677 + $0x10] sm:$0xff]
        %v1681 = vld [vmem:[%s1677 + $0x18] sm:$0xff]
        %v1682 = vld [vmem:[%s1677 + $0x20] sm:$0xff]
        %v1683 = vld [vmem:[%s1677 + $0x28] sm:$0xff]
        %v1684 = vld [vmem:[%s1677 + $0x30] sm:$0xff]
        %v1685 = vld [vmem:[%s1677 + $0x38] sm:$0xff]
        %v1686 = vld [vmem:[%s1677 + $0x40] sm:$0xff]
        %v1687 = vld [vmem:[%s1677 + $0x48] sm:$0xff]
        %v1688 = vld [vmem:[%s1677 + $0x50] sm:$0xff]
        %v1689 = vld [vmem:[%s1677 + $0x58] sm:$0xff]
        %1691 = vset.pattern.permute.xlu0 0
        %1692 = vperm.xlu0 %1691, %v1678
        %v1693 = vpop.permute.xlu0 %1692
        %1696 = vset.pattern.permute.xlu0 0
        %1697 = vperm.xlu0 %1696, %v1679
        %v1698 = vpop.permute.xlu0 %1697
        %1701 = vset.pattern.permute.xlu0 0
        %1702 = vperm.xlu0 %1701, %v1680
        %v1703 = vpop.permute.xlu0 %1702
        %1706 = vset.pattern.permute.xlu0 0
        %1707 = vperm.xlu0 %1706, %v1681
        %v1708 = vpop.permute.xlu0 %1707
        %1711 = vset.pattern.permute.xlu0 0
        %1712 = vperm.xlu0 %1711, %v1682
        %v1713 = vpop.permute.xlu0 %1712
        %1716 = vset.pattern.permute.xlu0 0
        %1717 = vperm.xlu0 %1716, %v1683
        %v1718 = vpop.permute.xlu0 %1717
        %1721 = vset.pattern.permute.xlu0 0
        %1722 = vperm.xlu0 %1721, %v1684
        %v1723 = vpop.permute.xlu0 %1722
        %1726 = vset.pattern.permute.xlu0 0
        %1727 = vperm.xlu0 %1726, %v1685
        %v1728 = vpop.permute.xlu0 %1727
        %1731 = vset.pattern.permute.xlu0 0
        %1732 = vperm.xlu0 %1731, %v1686
        %v1733 = vpop.permute.xlu0 %1732
        %1736 = vset.pattern.permute.xlu0 0
        %1737 = vperm.xlu0 %1736, %v1687
        %v1738 = vpop.permute.xlu0 %1737
        %1741 = vset.pattern.permute.xlu0 0
        %1742 = vperm.xlu0 %1741, %v1688
        %v1743 = vpop.permute.xlu0 %1742
        %1746 = vset.pattern.permute.xlu0 0
        %1747 = vperm.xlu0 %1746, %v1689
        %v1748 = vpop.permute.xlu0 %1747
        %v1750 = vmul.f32 %v1653, %v1693
        %v1751 = vmul.f32 %v1654, %v1693
        %v1752 = vmul.f32 %v1655, %v1698
        %v1753 = vmul.f32 %v1656, %v1698
        %v1754 = vmul.f32 %v1657, %v1703
        %v1755 = vmul.f32 %v1658, %v1703
        %v1756 = vmul.f32 %v1659, %v1708
        %v1757 = vmul.f32 %v1660, %v1708
        %v1758 = vmul.f32 %v1661, %v1713
        %v1759 = vmul.f32 %v1662, %v1713
        %v1760 = vmul.f32 %v1663, %v1718
        %v1761 = vmul.f32 %v1664, %v1718
        %v1762 = vmul.f32 %v1665, %v1723
        %v1763 = vmul.f32 %v1666, %v1723
        %v1764 = vmul.f32 %v1667, %v1728
        %v1765 = vmul.f32 %v1668, %v1728
        %v1766 = vmul.f32 %v1669, %v1733
        %v1767 = vmul.f32 %v1670, %v1733
        %v1768 = vmul.f32 %v1671, %v1738
        %v1769 = vmul.f32 %v1672, %v1738
        %v1770 = vmul.f32 %v1673, %v1743
        %v1771 = vmul.f32 %v1674, %v1743
        %v1772 = vmul.f32 %v1675, %v1748
        %v1773 = vmul.f32 %v1676, %v1748
        %v1774 = vadd.f32 %v1508, %v1750
        %v1775 = vadd.f32 %v1509, %v1751
        %v1776 = vadd.f32 %v1510, %v1752
        %v1777 = vadd.f32 %v1511, %v1753
        %v1778 = vadd.f32 %v1512, %v1754
        %v1779 = vadd.f32 %v1513, %v1755
        %v1780 = vadd.f32 %v1514, %v1756
        %v1781 = vadd.f32 %v1515, %v1757
        %v1782 = vadd.f32 %v1516, %v1758
        %v1783 = vadd.f32 %v1517, %v1759
        %v1784 = vadd.f32 %v1518, %v1760
        %v1785 = vadd.f32 %v1519, %v1761
        %v1786 = vadd.f32 %v1520, %v1762
        %v1787 = vadd.f32 %v1521, %v1763
        %v1788 = vadd.f32 %v1522, %v1764
        %v1789 = vadd.f32 %v1523, %v1765
        %v1790 = vadd.f32 %v1524, %v1766
        %v1791 = vadd.f32 %v1525, %v1767
        %v1792 = vadd.f32 %v1526, %v1768
        %v1793 = vadd.f32 %v1527, %v1769
        %v1794 = vadd.f32 %v1528, %v1770
        %v1795 = vadd.f32 %v1529, %v1771
        %v1796 = vadd.f32 %v1530, %v1772
        %v1797 = vadd.f32 %v1531, %v1773
        %s1798 = scalar_lea.vmem %s3, 384
        %v1799 = vld [vmem:[%s1798] sm:$0xff]
        %v1800 = vld [vmem:[%s1798 + $0x8] sm:$0xff]
        %v1801 = vld [vmem:[%s1798 + $0x10] sm:$0xff]
        %v1802 = vld [vmem:[%s1798 + $0x18] sm:$0xff]
        %v1803 = vld [vmem:[%s1798 + $0x20] sm:$0xff]
        %v1804 = vld [vmem:[%s1798 + $0x28] sm:$0xff]
        %v1805 = vld [vmem:[%s1798 + $0x30] sm:$0xff]
        %v1806 = vld [vmem:[%s1798 + $0x38] sm:$0xff]
        %v1807 = vld [vmem:[%s1798 + $0x40] sm:$0xff]
        %v1808 = vld [vmem:[%s1798 + $0x48] sm:$0xff]
        %v1809 = vld [vmem:[%s1798 + $0x50] sm:$0xff]
        %v1810 = vld [vmem:[%s1798 + $0x58] sm:$0xff]
        %1812 = vset.pattern.permute.xlu0 0
        %1813 = vperm.xlu0 %1812, %v1799
        %v1814 = vpop.permute.xlu0 %1813
        %1817 = vset.pattern.permute.xlu0 0
        %1818 = vperm.xlu0 %1817, %v1800
        %v1819 = vpop.permute.xlu0 %1818
        %1822 = vset.pattern.permute.xlu0 0
        %1823 = vperm.xlu0 %1822, %v1801
        %v1824 = vpop.permute.xlu0 %1823
        %1827 = vset.pattern.permute.xlu0 0
        %1828 = vperm.xlu0 %1827, %v1802
        %v1829 = vpop.permute.xlu0 %1828
        %1832 = vset.pattern.permute.xlu0 0
        %1833 = vperm.xlu0 %1832, %v1803
        %v1834 = vpop.permute.xlu0 %1833
        %1837 = vset.pattern.permute.xlu0 0
        %1838 = vperm.xlu0 %1837, %v1804
        %v1839 = vpop.permute.xlu0 %1838
        %1842 = vset.pattern.permute.xlu0 0
        %1843 = vperm.xlu0 %1842, %v1805
        %v1844 = vpop.permute.xlu0 %1843
        %1847 = vset.pattern.permute.xlu0 0
        %1848 = vperm.xlu0 %1847, %v1806
        %v1849 = vpop.permute.xlu0 %1848
        %1852 = vset.pattern.permute.xlu0 0
        %1853 = vperm.xlu0 %1852, %v1807
        %v1854 = vpop.permute.xlu0 %1853
        %1857 = vset.pattern.permute.xlu0 0
        %1858 = vperm.xlu0 %1857, %v1808
        %v1859 = vpop.permute.xlu0 %1858
        %1862 = vset.pattern.permute.xlu0 0
        %1863 = vperm.xlu0 %1862, %v1809
        %v1864 = vpop.permute.xlu0 %1863
        %1867 = vset.pattern.permute.xlu0 0
        %1868 = vperm.xlu0 %1867, %v1810
        %v1869 = vpop.permute.xlu0 %1868
        %v1871 = vmul.f32 %v633, %v1814
        %v1872 = vmul.f32 %v634, %v1814
        %v1873 = vmul.f32 %v636, %v1819
        %v1874 = vmul.f32 %v637, %v1819
        %v1875 = vmul.f32 %v639, %v1824
        %v1876 = vmul.f32 %v640, %v1824
        %v1877 = vmul.f32 %v642, %v1829
        %v1878 = vmul.f32 %v643, %v1829
        %v1879 = vmul.f32 %v645, %v1834
        %v1880 = vmul.f32 %v646, %v1834
        %v1881 = vmul.f32 %v648, %v1839
        %v1882 = vmul.f32 %v649, %v1839
        %v1883 = vmul.f32 %v651, %v1844
        %v1884 = vmul.f32 %v652, %v1844
        %v1885 = vmul.f32 %v654, %v1849
        %v1886 = vmul.f32 %v655, %v1849
        %v1887 = vmul.f32 %v657, %v1854
        %v1888 = vmul.f32 %v658, %v1854
        %v1889 = vmul.f32 %v660, %v1859
        %v1890 = vmul.f32 %v661, %v1859
        %v1891 = vmul.f32 %v663, %v1864
        %v1892 = vmul.f32 %v664, %v1864
        %v1893 = vmul.f32 %v666, %v1869
        %v1894 = vmul.f32 %v667, %v1869
        %v1895 = vadd.f32 %v1774, %v1871
        %v1896 = vadd.f32 %v1775, %v1872
        %v1897 = vadd.f32 %v1776, %v1873
        %v1898 = vadd.f32 %v1777, %v1874
        %v1899 = vadd.f32 %v1778, %v1875
        %v1900 = vadd.f32 %v1779, %v1876
        %v1901 = vadd.f32 %v1780, %v1877
        %v1902 = vadd.f32 %v1781, %v1878
        %v1903 = vadd.f32 %v1782, %v1879
        %v1904 = vadd.f32 %v1783, %v1880
        %v1905 = vadd.f32 %v1784, %v1881
        %v1906 = vadd.f32 %v1785, %v1882
        %v1907 = vadd.f32 %v1786, %v1883
        %v1908 = vadd.f32 %v1787, %v1884
        %v1909 = vadd.f32 %v1788, %v1885
        %v1910 = vadd.f32 %v1789, %v1886
        %v1911 = vadd.f32 %v1790, %v1887
        %v1912 = vadd.f32 %v1791, %v1888
        %v1913 = vadd.f32 %v1792, %v1889
        %v1914 = vadd.f32 %v1793, %v1890
        %v1915 = vadd.f32 %v1794, %v1891
        %v1916 = vadd.f32 %v1795, %v1892
        %v1917 = vadd.f32 %v1796, %v1893
        %v1918 = vadd.f32 %v1797, %v1894
        %v1919 = vld [vmem:[#allocation2 + $0x8] sm:$0xff]
        %v1920 = vld [vmem:[#allocation2 + $0x10] sm:$0xff]
        %v1921 = vld [vmem:[#allocation2 + $0x18] sm:$0xff]
        %v1922 = vld [vmem:[#allocation2 + $0x28] sm:$0xff]
        %v1923 = vld [vmem:[#allocation2 + $0x30] sm:$0xff]
        %v1924 = vld [vmem:[#allocation2 + $0x38] sm:$0xff]
        %v1925 = vld [vmem:[#allocation2 + $0x48] sm:$0xff]
        %v1926 = vld [vmem:[#allocation2 + $0x50] sm:$0xff]
        %v1927 = vld [vmem:[#allocation2 + $0x58] sm:$0xff]
        %v1928 = vld [vmem:[#allocation2 + $0x68] sm:$0xff]
        %v1929 = vld [vmem:[#allocation2 + $0x70] sm:$0xff]
        %v1930 = vld [vmem:[#allocation2 + $0x78] sm:$0xff]
        %v1931 = vld [vmem:[#allocation2 + $0x88] sm:$0xff]
        %v1932 = vld [vmem:[#allocation2 + $0x90] sm:$0xff]
        %v1933 = vld [vmem:[#allocation2 + $0x98] sm:$0xff]
        %v1934 = vld [vmem:[#allocation2 + $0xa8] sm:$0xff]
        %v1935 = vld [vmem:[#allocation2 + $0xb0] sm:$0xff]
        %v1936 = vld [vmem:[#allocation2 + $0xb8] sm:$0xff]
        %v1937 = vld [vmem:[#allocation2 + $0xc8] sm:$0xff]
        %v1938 = vld [vmem:[#allocation2 + $0xd0] sm:$0xff]
        %v1939 = vld [vmem:[#allocation2 + $0xd8] sm:$0xff]
        %v1940 = vld [vmem:[#allocation2 + $0xe8] sm:$0xff]
        %v1941 = vld [vmem:[#allocation2 + $0xf0] sm:$0xff]
        %v1942 = vld [vmem:[#allocation2 + $0xf8] sm:$0xff]
        %v1943 = vld [vmem:[#allocation2 + $0x108] sm:$0xff]
        %v1944 = vld [vmem:[#allocation2 + $0x110] sm:$0xff]
        %v1945 = vld [vmem:[#allocation2 + $0x118] sm:$0xff]
        %v1946 = vld [vmem:[#allocation2 + $0x128] sm:$0xff]
        %v1947 = vld [vmem:[#allocation2 + $0x130] sm:$0xff]
        %v1948 = vld [vmem:[#allocation2 + $0x138] sm:$0xff]
        %v1949 = vld [vmem:[#allocation2 + $0x148] sm:$0xff]
        %v1950 = vld [vmem:[#allocation2 + $0x150] sm:$0xff]
        %v1951 = vld [vmem:[#allocation2 + $0x158] sm:$0xff]
        %v1952 = vld [vmem:[#allocation2 + $0x168] sm:$0xff]
        %v1953 = vld [vmem:[#allocation2 + $0x170] sm:$0xff]
        %v1954 = vld [vmem:[#allocation2 + $0x178] sm:$0xff]
        %1991 = vrot.lane.b32.xlu0 %v1919, 127
        %v1992 = vpop.permute.xlu0 %1991
        %1993 = vrot.lane.b32.xlu0 %v1920, 127
        %v1994 = vpop.permute.xlu0 %1993
        %1995 = vrot.lane.b32.xlu0 %v1921, 127
        %v1996 = vpop.permute.xlu0 %1995
        %1997 = vrot.lane.b32.xlu0 %v1922, 127
        %v1998 = vpop.permute.xlu0 %1997
        %1999 = vrot.lane.b32.xlu0 %v1923, 127
        %v2000 = vpop.permute.xlu0 %1999
        %2001 = vrot.lane.b32.xlu0 %v1924, 127
        %v2002 = vpop.permute.xlu0 %2001
        %2003 = vrot.lane.b32.xlu0 %v1925, 127
        %v2004 = vpop.permute.xlu0 %2003
        %2005 = vrot.lane.b32.xlu0 %v1926, 127
        %v2006 = vpop.permute.xlu0 %2005
        %2007 = vrot.lane.b32.xlu0 %v1927, 127
        %v2008 = vpop.permute.xlu0 %2007
        %2009 = vrot.lane.b32.xlu0 %v1928, 127
        %v2010 = vpop.permute.xlu0 %2009
        %2011 = vrot.lane.b32.xlu0 %v1929, 127
        %v2012 = vpop.permute.xlu0 %2011
        %2013 = vrot.lane.b32.xlu0 %v1930, 127
        %v2014 = vpop.permute.xlu0 %2013
        %2015 = vrot.lane.b32.xlu0 %v1931, 127
        %v2016 = vpop.permute.xlu0 %2015
        %2017 = vrot.lane.b32.xlu0 %v1932, 127
        %v2018 = vpop.permute.xlu0 %2017
        %2019 = vrot.lane.b32.xlu0 %v1933, 127
        %v2020 = vpop.permute.xlu0 %2019
        %2021 = vrot.lane.b32.xlu0 %v1934, 127
        %v2022 = vpop.permute.xlu0 %2021
        %2023 = vrot.lane.b32.xlu0 %v1935, 127
        %v2024 = vpop.permute.xlu0 %2023
        %2025 = vrot.lane.b32.xlu0 %v1936, 127
        %v2026 = vpop.permute.xlu0 %2025
        %2027 = vrot.lane.b32.xlu0 %v1937, 127
        %v2028 = vpop.permute.xlu0 %2027
        %2029 = vrot.lane.b32.xlu0 %v1938, 127
        %v2030 = vpop.permute.xlu0 %2029
        %2031 = vrot.lane.b32.xlu0 %v1939, 127
        %v2032 = vpop.permute.xlu0 %2031
        %2033 = vrot.lane.b32.xlu0 %v1940, 127
        %v2034 = vpop.permute.xlu0 %2033
        %2035 = vrot.lane.b32.xlu0 %v1941, 127
        %v2036 = vpop.permute.xlu0 %2035
        %2037 = vrot.lane.b32.xlu0 %v1942, 127
        %v2038 = vpop.permute.xlu0 %2037
        %2039 = vrot.lane.b32.xlu0 %v1943, 127
        %v2040 = vpop.permute.xlu0 %2039
        %2041 = vrot.lane.b32.xlu0 %v1944, 127
        %v2042 = vpop.permute.xlu0 %2041
        %2043 = vrot.lane.b32.xlu0 %v1945, 127
        %v2044 = vpop.permute.xlu0 %2043
        %2045 = vrot.lane.b32.xlu0 %v1946, 127
        %v2046 = vpop.permute.xlu0 %2045
        %2047 = vrot.lane.b32.xlu0 %v1947, 127
        %v2048 = vpop.permute.xlu0 %2047
        %2049 = vrot.lane.b32.xlu0 %v1948, 127
        %v2050 = vpop.permute.xlu0 %2049
        %2051 = vrot.lane.b32.xlu0 %v1949, 127
        %v2052 = vpop.permute.xlu0 %2051
        %2053 = vrot.lane.b32.xlu0 %v1950, 127
        %v2054 = vpop.permute.xlu0 %2053
        %2055 = vrot.lane.b32.xlu0 %v1951, 127
        %v2056 = vpop.permute.xlu0 %2055
        %2057 = vrot.lane.b32.xlu0 %v1952, 127
        %v2058 = vpop.permute.xlu0 %2057
        %2059 = vrot.lane.b32.xlu0 %v1953, 127
        %v2060 = vpop.permute.xlu0 %2059
        %2061 = vrot.lane.b32.xlu0 %v1954, 127
        %v2062 = vpop.permute.xlu0 %2061
        %vm2063 = vcmask 1039360
        %v2064 = vsel %vm2063, %v1992, %v1994
        %v2065 = vsel %vm2063, %v1994, %v1996
        %v2066 = vsel %vm2063, %v1998, %v2000
        %v2067 = vsel %vm2063, %v2000, %v2002
        %v2068 = vsel %vm2063, %v2004, %v2006
        %v2069 = vsel %vm2063, %v2006, %v2008
        %v2070 = vsel %vm2063, %v2010, %v2012
        %v2071 = vsel %vm2063, %v2012, %v2014
        %v2072 = vsel %vm2063, %v2016, %v2018
        %v2073 = vsel %vm2063, %v2018, %v2020
        %v2074 = vsel %vm2063, %v2022, %v2024
        %v2075 = vsel %vm2063, %v2024, %v2026
        %v2076 = vsel %vm2063, %v2028, %v2030
        %v2077 = vsel %vm2063, %v2030, %v2032
        %v2078 = vsel %vm2063, %v2034, %v2036
        %v2079 = vsel %vm2063, %v2036, %v2038
        %v2080 = vsel %vm2063, %v2040, %v2042
        %v2081 = vsel %vm2063, %v2042, %v2044
        %v2082 = vsel %vm2063, %v2046, %v2048
        %v2083 = vsel %vm2063, %v2048, %v2050
        %v2084 = vsel %vm2063, %v2052, %v2054
        %v2085 = vsel %vm2063, %v2054, %v2056
        %v2086 = vsel %vm2063, %v2058, %v2060
        %v2087 = vsel %vm2063, %v2060, %v2062
        %v2112 = vsel %vm1264, %v2064, 0.0
        %v2113 = vsel %vm1265, %v2065, 0.0
        %v2114 = vsel %vm1264, %v2066, 0.0
        %v2115 = vsel %vm1265, %v2067, 0.0
        %v2116 = vsel %vm1264, %v2068, 0.0
        %v2117 = vsel %vm1265, %v2069, 0.0
        %v2118 = vsel %vm1264, %v2070, 0.0
        %v2119 = vsel %vm1265, %v2071, 0.0
        %v2120 = vsel %vm1264, %v2072, 0.0
        %v2121 = vsel %vm1265, %v2073, 0.0
        %v2122 = vsel %vm1264, %v2074, 0.0
        %v2123 = vsel %vm1265, %v2075, 0.0
        %v2124 = vsel %vm1264, %v2076, 0.0
        %v2125 = vsel %vm1265, %v2077, 0.0
        %v2126 = vsel %vm1264, %v2078, 0.0
        %v2127 = vsel %vm1265, %v2079, 0.0
        %v2128 = vsel %vm1264, %v2080, 0.0
        %v2129 = vsel %vm1265, %v2081, 0.0
        %v2130 = vsel %vm1264, %v2082, 0.0
        %v2131 = vsel %vm1265, %v2083, 0.0
        %v2132 = vsel %vm1264, %v2084, 0.0
        %v2133 = vsel %vm1265, %v2085, 0.0
        %v2134 = vsel %vm1264, %v2086, 0.0
        %v2135 = vsel %vm1265, %v2087, 0.0
        %s2136 = scalar_lea.vmem %s3, 480
        %v2137 = vld [vmem:[%s2136] sm:$0xff]
        %v2138 = vld [vmem:[%s2136 + $0x8] sm:$0xff]
        %v2139 = vld [vmem:[%s2136 + $0x10] sm:$0xff]
        %v2140 = vld [vmem:[%s2136 + $0x18] sm:$0xff]
        %v2141 = vld [vmem:[%s2136 + $0x20] sm:$0xff]
        %v2142 = vld [vmem:[%s2136 + $0x28] sm:$0xff]
        %v2143 = vld [vmem:[%s2136 + $0x30] sm:$0xff]
        %v2144 = vld [vmem:[%s2136 + $0x38] sm:$0xff]
        %v2145 = vld [vmem:[%s2136 + $0x40] sm:$0xff]
        %v2146 = vld [vmem:[%s2136 + $0x48] sm:$0xff]
        %v2147 = vld [vmem:[%s2136 + $0x50] sm:$0xff]
        %v2148 = vld [vmem:[%s2136 + $0x58] sm:$0xff]
        %2150 = vset.pattern.permute.xlu0 0
        %2151 = vperm.xlu0 %2150, %v2137
        %v2152 = vpop.permute.xlu0 %2151
        %2155 = vset.pattern.permute.xlu0 0
        %2156 = vperm.xlu0 %2155, %v2138
        %v2157 = vpop.permute.xlu0 %2156
        %2160 = vset.pattern.permute.xlu0 0
        %2161 = vperm.xlu0 %2160, %v2139
        %v2162 = vpop.permute.xlu0 %2161
        %2165 = vset.pattern.permute.xlu0 0
        %2166 = vperm.xlu0 %2165, %v2140
        %v2167 = vpop.permute.xlu0 %2166
        %2170 = vset.pattern.permute.xlu0 0
        %2171 = vperm.xlu0 %2170, %v2141
        %v2172 = vpop.permute.xlu0 %2171
        %2175 = vset.pattern.permute.xlu0 0
        %2176 = vperm.xlu0 %2175, %v2142
        %v2177 = vpop.permute.xlu0 %2176
        %2180 = vset.pattern.permute.xlu0 0
        %2181 = vperm.xlu0 %2180, %v2143
        %v2182 = vpop.permute.xlu0 %2181
        %2185 = vset.pattern.permute.xlu0 0
        %2186 = vperm.xlu0 %2185, %v2144
        %v2187 = vpop.permute.xlu0 %2186
        %2190 = vset.pattern.permute.xlu0 0
        %2191 = vperm.xlu0 %2190, %v2145
        %v2192 = vpop.permute.xlu0 %2191
        %2195 = vset.pattern.permute.xlu0 0
        %2196 = vperm.xlu0 %2195, %v2146
        %v2197 = vpop.permute.xlu0 %2196
        %2200 = vset.pattern.permute.xlu0 0
        %2201 = vperm.xlu0 %2200, %v2147
        %v2202 = vpop.permute.xlu0 %2201
        %2205 = vset.pattern.permute.xlu0 0
        %2206 = vperm.xlu0 %2205, %v2148
        %v2207 = vpop.permute.xlu0 %2206
        %v2209 = vmul.f32 %v2112, %v2152
        %v2210 = vmul.f32 %v2113, %v2152
        %v2211 = vmul.f32 %v2114, %v2157
        %v2212 = vmul.f32 %v2115, %v2157
        %v2213 = vmul.f32 %v2116, %v2162
        %v2214 = vmul.f32 %v2117, %v2162
        %v2215 = vmul.f32 %v2118, %v2167
        %v2216 = vmul.f32 %v2119, %v2167
        %v2217 = vmul.f32 %v2120, %v2172
        %v2218 = vmul.f32 %v2121, %v2172
        %v2219 = vmul.f32 %v2122, %v2177
        %v2220 = vmul.f32 %v2123, %v2177
        %v2221 = vmul.f32 %v2124, %v2182
        %v2222 = vmul.f32 %v2125, %v2182
        %v2223 = vmul.f32 %v2126, %v2187
        %v2224 = vmul.f32 %v2127, %v2187
        %v2225 = vmul.f32 %v2128, %v2192
        %v2226 = vmul.f32 %v2129, %v2192
        %v2227 = vmul.f32 %v2130, %v2197
        %v2228 = vmul.f32 %v2131, %v2197
        %v2229 = vmul.f32 %v2132, %v2202
        %v2230 = vmul.f32 %v2133, %v2202
        %v2231 = vmul.f32 %v2134, %v2207
        %v2232 = vmul.f32 %v2135, %v2207
        %v2233 = vadd.f32 %v1895, %v2209
        %v2234 = vadd.f32 %v1896, %v2210
        %v2235 = vadd.f32 %v1897, %v2211
        %v2236 = vadd.f32 %v1898, %v2212
        %v2237 = vadd.f32 %v1899, %v2213
        %v2238 = vadd.f32 %v1900, %v2214
        %v2239 = vadd.f32 %v1901, %v2215
        %v2240 = vadd.f32 %v1902, %v2216
        %v2241 = vadd.f32 %v1903, %v2217
        %v2242 = vadd.f32 %v1904, %v2218
        %v2243 = vadd.f32 %v1905, %v2219
        %v2244 = vadd.f32 %v1906, %v2220
        %v2245 = vadd.f32 %v1907, %v2221
        %v2246 = vadd.f32 %v1908, %v2222
        %v2247 = vadd.f32 %v1909, %v2223
        %v2248 = vadd.f32 %v1910, %v2224
        %v2249 = vadd.f32 %v1911, %v2225
        %v2250 = vadd.f32 %v1912, %v2226
        %v2251 = vadd.f32 %v1913, %v2227
        %v2252 = vadd.f32 %v1914, %v2228
        %v2253 = vadd.f32 %v1915, %v2229
        %v2254 = vadd.f32 %v1916, %v2230
        %v2255 = vadd.f32 %v1917, %v2231
        %v2256 = vadd.f32 %v1918, %v2232
        %2257 = vrot.lane.b32.xlu0 %v1919, 113
        %v2258 = vpop.permute.xlu0 %2257
        %2259 = vrot.lane.b32.xlu0 %v1920, 113
        %v2260 = vpop.permute.xlu0 %2259
        %2261 = vrot.lane.b32.xlu0 %v1921, 113
        %v2262 = vpop.permute.xlu0 %2261
        %2263 = vrot.lane.b32.xlu0 %v1922, 113
        %v2264 = vpop.permute.xlu0 %2263
        %2265 = vrot.lane.b32.xlu0 %v1923, 113
        %v2266 = vpop.permute.xlu0 %2265
        %2267 = vrot.lane.b32.xlu0 %v1924, 113
        %v2268 = vpop.permute.xlu0 %2267
        %2269 = vrot.lane.b32.xlu0 %v1925, 113
        %v2270 = vpop.permute.xlu0 %2269
        %2271 = vrot.lane.b32.xlu0 %v1926, 113
        %v2272 = vpop.permute.xlu0 %2271
        %2273 = vrot.lane.b32.xlu0 %v1927, 113
        %v2274 = vpop.permute.xlu0 %2273
        %2275 = vrot.lane.b32.xlu0 %v1928, 113
        %v2276 = vpop.permute.xlu0 %2275
        %2277 = vrot.lane.b32.xlu0 %v1929, 113
        %v2278 = vpop.permute.xlu0 %2277
        %2279 = vrot.lane.b32.xlu0 %v1930, 113
        %v2280 = vpop.permute.xlu0 %2279
        %2281 = vrot.lane.b32.xlu0 %v1931, 113
        %v2282 = vpop.permute.xlu0 %2281
        %2283 = vrot.lane.b32.xlu0 %v1932, 113
        %v2284 = vpop.permute.xlu0 %2283
        %2285 = vrot.lane.b32.xlu0 %v1933, 113
        %v2286 = vpop.permute.xlu0 %2285
        %2287 = vrot.lane.b32.xlu0 %v1934, 113
        %v2288 = vpop.permute.xlu0 %2287
        %2289 = vrot.lane.b32.xlu0 %v1935, 113
        %v2290 = vpop.permute.xlu0 %2289
        %2291 = vrot.lane.b32.xlu0 %v1936, 113
        %v2292 = vpop.permute.xlu0 %2291
        %2293 = vrot.lane.b32.xlu0 %v1937, 113
        %v2294 = vpop.permute.xlu0 %2293
        %2295 = vrot.lane.b32.xlu0 %v1938, 113
        %v2296 = vpop.permute.xlu0 %2295
        %2297 = vrot.lane.b32.xlu0 %v1939, 113
        %v2298 = vpop.permute.xlu0 %2297
        %2299 = vrot.lane.b32.xlu0 %v1940, 113
        %v2300 = vpop.permute.xlu0 %2299
        %2301 = vrot.lane.b32.xlu0 %v1941, 113
        %v2302 = vpop.permute.xlu0 %2301
        %2303 = vrot.lane.b32.xlu0 %v1942, 113
        %v2304 = vpop.permute.xlu0 %2303
        %2305 = vrot.lane.b32.xlu0 %v1943, 113
        %v2306 = vpop.permute.xlu0 %2305
        %2307 = vrot.lane.b32.xlu0 %v1944, 113
        %v2308 = vpop.permute.xlu0 %2307
        %2309 = vrot.lane.b32.xlu0 %v1945, 113
        %v2310 = vpop.permute.xlu0 %2309
        %2311 = vrot.lane.b32.xlu0 %v1946, 113
        %v2312 = vpop.permute.xlu0 %2311
        %2313 = vrot.lane.b32.xlu0 %v1947, 113
        %v2314 = vpop.permute.xlu0 %2313
        %2315 = vrot.lane.b32.xlu0 %v1948, 113
        %v2316 = vpop.permute.xlu0 %2315
        %2317 = vrot.lane.b32.xlu0 %v1949, 113
        %v2318 = vpop.permute.xlu0 %2317
        %2319 = vrot.lane.b32.xlu0 %v1950, 113
        %v2320 = vpop.permute.xlu0 %2319
        %2321 = vrot.lane.b32.xlu0 %v1951, 113
        %v2322 = vpop.permute.xlu0 %2321
        %2323 = vrot.lane.b32.xlu0 %v1952, 113
        %v2324 = vpop.permute.xlu0 %2323
        %2325 = vrot.lane.b32.xlu0 %v1953, 113
        %v2326 = vpop.permute.xlu0 %2325
        %2327 = vrot.lane.b32.xlu0 %v1954, 113
        %v2328 = vpop.permute.xlu0 %2327
        %vm2329 = vcmask 924672
        %v2330 = vsel %vm2329, %v2258, %v2260
        %v2331 = vsel %vm2329, %v2260, %v2262
        %v2332 = vsel %vm2329, %v2264, %v2266
        %v2333 = vsel %vm2329, %v2266, %v2268
        %v2334 = vsel %vm2329, %v2270, %v2272
        %v2335 = vsel %vm2329, %v2272, %v2274
        %v2336 = vsel %vm2329, %v2276, %v2278
        %v2337 = vsel %vm2329, %v2278, %v2280
        %v2338 = vsel %vm2329, %v2282, %v2284
        %v2339 = vsel %vm2329, %v2284, %v2286
        %v2340 = vsel %vm2329, %v2288, %v2290
        %v2341 = vsel %vm2329, %v2290, %v2292
        %v2342 = vsel %vm2329, %v2294, %v2296
        %v2343 = vsel %vm2329, %v2296, %v2298
        %v2344 = vsel %vm2329, %v2300, %v2302
        %v2345 = vsel %vm2329, %v2302, %v2304
        %v2346 = vsel %vm2329, %v2306, %v2308
        %v2347 = vsel %vm2329, %v2308, %v2310
        %v2348 = vsel %vm2329, %v2312, %v2314
        %v2349 = vsel %vm2329, %v2314, %v2316
        %v2350 = vsel %vm2329, %v2318, %v2320
        %v2351 = vsel %vm2329, %v2320, %v2322
        %v2352 = vsel %vm2329, %v2324, %v2326
        %v2353 = vsel %vm2329, %v2326, %v2328
        %v2378 = vsel %vm670, %v2330, 0.0
        %v2379 = vsel %vm671, %v2331, 0.0
        %v2380 = vsel %vm670, %v2332, 0.0
        %v2381 = vsel %vm671, %v2333, 0.0
        %v2382 = vsel %vm670, %v2334, 0.0
        %v2383 = vsel %vm671, %v2335, 0.0
        %v2384 = vsel %vm670, %v2336, 0.0
        %v2385 = vsel %vm671, %v2337, 0.0
        %v2386 = vsel %vm670, %v2338, 0.0
        %v2387 = vsel %vm671, %v2339, 0.0
        %v2388 = vsel %vm670, %v2340, 0.0
        %v2389 = vsel %vm671, %v2341, 0.0
        %v2390 = vsel %vm670, %v2342, 0.0
        %v2391 = vsel %vm671, %v2343, 0.0
        %v2392 = vsel %vm670, %v2344, 0.0
        %v2393 = vsel %vm671, %v2345, 0.0
        %v2394 = vsel %vm670, %v2346, 0.0
        %v2395 = vsel %vm671, %v2347, 0.0
        %v2396 = vsel %vm670, %v2348, 0.0
        %v2397 = vsel %vm671, %v2349, 0.0
        %v2398 = vsel %vm670, %v2350, 0.0
        %v2399 = vsel %vm671, %v2351, 0.0
        %v2400 = vsel %vm670, %v2352, 0.0
        %v2401 = vsel %vm671, %v2353, 0.0
        %s2402 = scalar_lea.vmem %s3, 576
        %v2403 = vld [vmem:[%s2402] sm:$0xff]
        %v2404 = vld [vmem:[%s2402 + $0x8] sm:$0xff]
        %v2405 = vld [vmem:[%s2402 + $0x10] sm:$0xff]
        %v2406 = vld [vmem:[%s2402 + $0x18] sm:$0xff]
        %v2407 = vld [vmem:[%s2402 + $0x20] sm:$0xff]
        %v2408 = vld [vmem:[%s2402 + $0x28] sm:$0xff]
        %v2409 = vld [vmem:[%s2402 + $0x30] sm:$0xff]
        %v2410 = vld [vmem:[%s2402 + $0x38] sm:$0xff]
        %v2411 = vld [vmem:[%s2402 + $0x40] sm:$0xff]
        %v2412 = vld [vmem:[%s2402 + $0x48] sm:$0xff]
        %v2413 = vld [vmem:[%s2402 + $0x50] sm:$0xff]
        %v2414 = vld [vmem:[%s2402 + $0x58] sm:$0xff]
        %2416 = vset.pattern.permute.xlu0 0
        %2417 = vperm.xlu0 %2416, %v2403
        %v2418 = vpop.permute.xlu0 %2417
        %2421 = vset.pattern.permute.xlu0 0
        %2422 = vperm.xlu0 %2421, %v2404
        %v2423 = vpop.permute.xlu0 %2422
        %2426 = vset.pattern.permute.xlu0 0
        %2427 = vperm.xlu0 %2426, %v2405
        %v2428 = vpop.permute.xlu0 %2427
        %2431 = vset.pattern.permute.xlu0 0
        %2432 = vperm.xlu0 %2431, %v2406
        %v2433 = vpop.permute.xlu0 %2432
        %2436 = vset.pattern.permute.xlu0 0
        %2437 = vperm.xlu0 %2436, %v2407
        %v2438 = vpop.permute.xlu0 %2437
        %2441 = vset.pattern.permute.xlu0 0
        %2442 = vperm.xlu0 %2441, %v2408
        %v2443 = vpop.permute.xlu0 %2442
        %2446 = vset.pattern.permute.xlu0 0
        %2447 = vperm.xlu0 %2446, %v2409
        %v2448 = vpop.permute.xlu0 %2447
        %2451 = vset.pattern.permute.xlu0 0
        %2452 = vperm.xlu0 %2451, %v2410
        %v2453 = vpop.permute.xlu0 %2452
        %2456 = vset.pattern.permute.xlu0 0
        %2457 = vperm.xlu0 %2456, %v2411
        %v2458 = vpop.permute.xlu0 %2457
        %2461 = vset.pattern.permute.xlu0 0
        %2462 = vperm.xlu0 %2461, %v2412
        %v2463 = vpop.permute.xlu0 %2462
        %2466 = vset.pattern.permute.xlu0 0
        %2467 = vperm.xlu0 %2466, %v2413
        %v2468 = vpop.permute.xlu0 %2467
        %2471 = vset.pattern.permute.xlu0 0
        %2472 = vperm.xlu0 %2471, %v2414
        %v2473 = vpop.permute.xlu0 %2472
        %v2475 = vmul.f32 %v2378, %v2418
        %v2476 = vmul.f32 %v2379, %v2418
        %v2477 = vmul.f32 %v2380, %v2423
        %v2478 = vmul.f32 %v2381, %v2423
        %v2479 = vmul.f32 %v2382, %v2428
        %v2480 = vmul.f32 %v2383, %v2428
        %v2481 = vmul.f32 %v2384, %v2433
        %v2482 = vmul.f32 %v2385, %v2433
        %v2483 = vmul.f32 %v2386, %v2438
        %v2484 = vmul.f32 %v2387, %v2438
        %v2485 = vmul.f32 %v2388, %v2443
        %v2486 = vmul.f32 %v2389, %v2443
        %v2487 = vmul.f32 %v2390, %v2448
        %v2488 = vmul.f32 %v2391, %v2448
        %v2489 = vmul.f32 %v2392, %v2453
        %v2490 = vmul.f32 %v2393, %v2453
        %v2491 = vmul.f32 %v2394, %v2458
        %v2492 = vmul.f32 %v2395, %v2458
        %v2493 = vmul.f32 %v2396, %v2463
        %v2494 = vmul.f32 %v2397, %v2463
        %v2495 = vmul.f32 %v2398, %v2468
        %v2496 = vmul.f32 %v2399, %v2468
        %v2497 = vmul.f32 %v2400, %v2473
        %v2498 = vmul.f32 %v2401, %v2473
        %v2499 = vadd.f32 %v2233, %v2475
        %v2500 = vadd.f32 %v2234, %v2476
        %v2501 = vadd.f32 %v2235, %v2477
        %v2502 = vadd.f32 %v2236, %v2478
        %v2503 = vadd.f32 %v2237, %v2479
        %v2504 = vadd.f32 %v2238, %v2480
        %v2505 = vadd.f32 %v2239, %v2481
        %v2506 = vadd.f32 %v2240, %v2482
        %v2507 = vadd.f32 %v2241, %v2483
        %v2508 = vadd.f32 %v2242, %v2484
        %v2509 = vadd.f32 %v2243, %v2485
        %v2510 = vadd.f32 %v2244, %v2486
        %v2511 = vadd.f32 %v2245, %v2487
        %v2512 = vadd.f32 %v2246, %v2488
        %v2513 = vadd.f32 %v2247, %v2489
        %v2514 = vadd.f32 %v2248, %v2490
        %v2515 = vadd.f32 %v2249, %v2491
        %v2516 = vadd.f32 %v2250, %v2492
        %v2517 = vadd.f32 %v2251, %v2493
        %v2518 = vadd.f32 %v2252, %v2494
        %v2519 = vadd.f32 %v2253, %v2495
        %v2520 = vadd.f32 %v2254, %v2496
        %v2521 = vadd.f32 %v2255, %v2497
        %v2522 = vadd.f32 %v2256, %v2498
        %s2523 = scalar_lea.vmem %s3, 672
        %v2524 = vld [vmem:[%s2523] sm:$0xff]
        %v2525 = vld [vmem:[%s2523 + $0x8] sm:$0xff]
        %v2526 = vld [vmem:[%s2523 + $0x10] sm:$0xff]
        %v2527 = vld [vmem:[%s2523 + $0x18] sm:$0xff]
        %v2528 = vld [vmem:[%s2523 + $0x20] sm:$0xff]
        %v2529 = vld [vmem:[%s2523 + $0x28] sm:$0xff]
        %v2530 = vld [vmem:[%s2523 + $0x30] sm:$0xff]
        %v2531 = vld [vmem:[%s2523 + $0x38] sm:$0xff]
        %v2532 = vld [vmem:[%s2523 + $0x40] sm:$0xff]
        %v2533 = vld [vmem:[%s2523 + $0x48] sm:$0xff]
        %v2534 = vld [vmem:[%s2523 + $0x50] sm:$0xff]
        %v2535 = vld [vmem:[%s2523 + $0x58] sm:$0xff]
        %2537 = vset.pattern.permute.xlu0 0
        %2538 = vperm.xlu0 %2537, %v2524
        %v2539 = vpop.permute.xlu0 %2538
        %2542 = vset.pattern.permute.xlu0 0
        %2543 = vperm.xlu0 %2542, %v2525
        %v2544 = vpop.permute.xlu0 %2543
        %2547 = vset.pattern.permute.xlu0 0
        %2548 = vperm.xlu0 %2547, %v2526
        %v2549 = vpop.permute.xlu0 %2548
        %2552 = vset.pattern.permute.xlu0 0
        %2553 = vperm.xlu0 %2552, %v2527
        %v2554 = vpop.permute.xlu0 %2553
        %2557 = vset.pattern.permute.xlu0 0
        %2558 = vperm.xlu0 %2557, %v2528
        %v2559 = vpop.permute.xlu0 %2558
        %2562 = vset.pattern.permute.xlu0 0
        %2563 = vperm.xlu0 %2562, %v2529
        %v2564 = vpop.permute.xlu0 %2563
        %2567 = vset.pattern.permute.xlu0 0
        %2568 = vperm.xlu0 %2567, %v2530
        %v2569 = vpop.permute.xlu0 %2568
        %2572 = vset.pattern.permute.xlu0 0
        %2573 = vperm.xlu0 %2572, %v2531
        %v2574 = vpop.permute.xlu0 %2573
        %2577 = vset.pattern.permute.xlu0 0
        %2578 = vperm.xlu0 %2577, %v2532
        %v2579 = vpop.permute.xlu0 %2578
        %2582 = vset.pattern.permute.xlu0 0
        %2583 = vperm.xlu0 %2582, %v2533
        %v2584 = vpop.permute.xlu0 %2583
        %2587 = vset.pattern.permute.xlu0 0
        %2588 = vperm.xlu0 %2587, %v2534
        %v2589 = vpop.permute.xlu0 %2588
        %2592 = vset.pattern.permute.xlu0 0
        %2593 = vperm.xlu0 %2592, %v2535
        %v2594 = vpop.permute.xlu0 %2593
        %v2596 = vmul.f32 %v1919, %v2539
        %v2597 = vmul.f32 %v1920, %v2539
        %v2598 = vmul.f32 %v1921, %v2539
        %v2599 = vmul.f32 %v1922, %v2544
        %v2600 = vmul.f32 %v1923, %v2544
        %v2601 = vmul.f32 %v1924, %v2544
        %v2602 = vmul.f32 %v1925, %v2549
        %v2603 = vmul.f32 %v1926, %v2549
        %v2604 = vmul.f32 %v1927, %v2549
        %v2605 = vmul.f32 %v1928, %v2554
        %v2606 = vmul.f32 %v1929, %v2554
        %v2607 = vmul.f32 %v1930, %v2554
        %v2608 = vmul.f32 %v1931, %v2559
        %v2609 = vmul.f32 %v1932, %v2559
        %v2610 = vmul.f32 %v1933, %v2559
        %v2611 = vmul.f32 %v1934, %v2564
        %v2612 = vmul.f32 %v1935, %v2564
        %v2613 = vmul.f32 %v1936, %v2564
        %v2614 = vmul.f32 %v1937, %v2569
        %v2615 = vmul.f32 %v1938, %v2569
        %v2616 = vmul.f32 %v1939, %v2569
        %v2617 = vmul.f32 %v1940, %v2574
        %v2618 = vmul.f32 %v1941, %v2574
        %v2619 = vmul.f32 %v1942, %v2574
        %v2620 = vmul.f32 %v1943, %v2579
        %v2621 = vmul.f32 %v1944, %v2579
        %v2622 = vmul.f32 %v1945, %v2579
        %v2623 = vmul.f32 %v1946, %v2584
        %v2624 = vmul.f32 %v1947, %v2584
        %v2625 = vmul.f32 %v1948, %v2584
        %v2626 = vmul.f32 %v1949, %v2589
        %v2627 = vmul.f32 %v1950, %v2589
        %v2628 = vmul.f32 %v1951, %v2589
        %v2629 = vmul.f32 %v1952, %v2594
        %v2630 = vmul.f32 %v1953, %v2594
        %v2631 = vmul.f32 %v1954, %v2594
        %2668 = vrot.lane.b32.xlu0 %v2596, 112
        %v2669 = vpop.permute.xlu0 %2668
        %2670 = vrot.lane.b32.xlu0 %v2597, 112
        %v2671 = vpop.permute.xlu0 %2670
        %2672 = vrot.lane.b32.xlu0 %v2598, 112
        %v2673 = vpop.permute.xlu0 %2672
        %2674 = vrot.lane.b32.xlu0 %v2599, 112
        %v2675 = vpop.permute.xlu0 %2674
        %2676 = vrot.lane.b32.xlu0 %v2600, 112
        %v2677 = vpop.permute.xlu0 %2676
        %2678 = vrot.lane.b32.xlu0 %v2601, 112
        %v2679 = vpop.permute.xlu0 %2678
        %2680 = vrot.lane.b32.xlu0 %v2602, 112
        %v2681 = vpop.permute.xlu0 %2680
        %2682 = vrot.lane.b32.xlu0 %v2603, 112
        %v2683 = vpop.permute.xlu0 %2682
        %2684 = vrot.lane.b32.xlu0 %v2604, 112
        %v2685 = vpop.permute.xlu0 %2684
        %2686 = vrot.lane.b32.xlu0 %v2605, 112
        %v2687 = vpop.permute.xlu0 %2686
        %2688 = vrot.lane.b32.xlu0 %v2606, 112
        %v2689 = vpop.permute.xlu0 %2688
        %2690 = vrot.lane.b32.xlu0 %v2607, 112
        %v2691 = vpop.permute.xlu0 %2690
        %2692 = vrot.lane.b32.xlu0 %v2608, 112
        %v2693 = vpop.permute.xlu0 %2692
        %2694 = vrot.lane.b32.xlu0 %v2609, 112
        %v2695 = vpop.permute.xlu0 %2694
        %2696 = vrot.lane.b32.xlu0 %v2610, 112
        %v2697 = vpop.permute.xlu0 %2696
        %2698 = vrot.lane.b32.xlu0 %v2611, 112
        %v2699 = vpop.permute.xlu0 %2698
        %2700 = vrot.lane.b32.xlu0 %v2612, 112
        %v2701 = vpop.permute.xlu0 %2700
        %2702 = vrot.lane.b32.xlu0 %v2613, 112
        %v2703 = vpop.permute.xlu0 %2702
        %2704 = vrot.lane.b32.xlu0 %v2614, 112
        %v2705 = vpop.permute.xlu0 %2704
        %2706 = vrot.lane.b32.xlu0 %v2615, 112
        %v2707 = vpop.permute.xlu0 %2706
        %2708 = vrot.lane.b32.xlu0 %v2616, 112
        %v2709 = vpop.permute.xlu0 %2708
        %2710 = vrot.lane.b32.xlu0 %v2617, 112
        %v2711 = vpop.permute.xlu0 %2710
        %2712 = vrot.lane.b32.xlu0 %v2618, 112
        %v2713 = vpop.permute.xlu0 %2712
        %2714 = vrot.lane.b32.xlu0 %v2619, 112
        %v2715 = vpop.permute.xlu0 %2714
        %2716 = vrot.lane.b32.xlu0 %v2620, 112
        %v2717 = vpop.permute.xlu0 %2716
        %2718 = vrot.lane.b32.xlu0 %v2621, 112
        %v2719 = vpop.permute.xlu0 %2718
        %2720 = vrot.lane.b32.xlu0 %v2622, 112
        %v2721 = vpop.permute.xlu0 %2720
        %2722 = vrot.lane.b32.xlu0 %v2623, 112
        %v2723 = vpop.permute.xlu0 %2722
        %2724 = vrot.lane.b32.xlu0 %v2624, 112
        %v2725 = vpop.permute.xlu0 %2724
        %2726 = vrot.lane.b32.xlu0 %v2625, 112
        %v2727 = vpop.permute.xlu0 %2726
        %2728 = vrot.lane.b32.xlu0 %v2626, 112
        %v2729 = vpop.permute.xlu0 %2728
        %2730 = vrot.lane.b32.xlu0 %v2627, 112
        %v2731 = vpop.permute.xlu0 %2730
        %2732 = vrot.lane.b32.xlu0 %v2628, 112
        %v2733 = vpop.permute.xlu0 %2732
        %2734 = vrot.lane.b32.xlu0 %v2629, 112
        %v2735 = vpop.permute.xlu0 %2734
        %2736 = vrot.lane.b32.xlu0 %v2630, 112
        %v2737 = vpop.permute.xlu0 %2736
        %2738 = vrot.lane.b32.xlu0 %v2631, 112
        %v2739 = vpop.permute.xlu0 %2738
        %vm2740 = vcmask 916480
        %v2741 = vsel %vm2740, %v2669, %v2671
        %v2742 = vsel %vm2740, %v2671, %v2673
        %v2743 = vsel %vm2740, %v2675, %v2677
        %v2744 = vsel %vm2740, %v2677, %v2679
        %v2745 = vsel %vm2740, %v2681, %v2683
        %v2746 = vsel %vm2740, %v2683, %v2685
        %v2747 = vsel %vm2740, %v2687, %v2689
        %v2748 = vsel %vm2740, %v2689, %v2691
        %v2749 = vsel %vm2740, %v2693, %v2695
        %v2750 = vsel %vm2740, %v2695, %v2697
        %v2751 = vsel %vm2740, %v2699, %v2701
        %v2752 = vsel %vm2740, %v2701, %v2703
        %v2753 = vsel %vm2740, %v2705, %v2707
        %v2754 = vsel %vm2740, %v2707, %v2709
        %v2755 = vsel %vm2740, %v2711, %v2713
        %v2756 = vsel %vm2740, %v2713, %v2715
        %v2757 = vsel %vm2740, %v2717, %v2719
        %v2758 = vsel %vm2740, %v2719, %v2721
        %v2759 = vsel %vm2740, %v2723, %v2725
        %v2760 = vsel %vm2740, %v2725, %v2727
        %v2761 = vsel %vm2740, %v2729, %v2731
        %v2762 = vsel %vm2740, %v2731, %v2733
        %v2763 = vsel %vm2740, %v2735, %v2737
        %v2764 = vsel %vm2740, %v2737, %v2739
        %v2789 = vadd.f32 %v2499, %v2741
        %v2790 = vadd.f32 %v2500, %v2742
        %v2791 = vadd.f32 %v2501, %v2743
        %v2792 = vadd.f32 %v2502, %v2744
        %v2793 = vadd.f32 %v2503, %v2745
        %v2794 = vadd.f32 %v2504, %v2746
        %v2795 = vadd.f32 %v2505, %v2747
        %v2796 = vadd.f32 %v2506, %v2748
        %v2797 = vadd.f32 %v2507, %v2749
        %v2798 = vadd.f32 %v2508, %v2750
        %v2799 = vadd.f32 %v2509, %v2751
        %v2800 = vadd.f32 %v2510, %v2752
        %v2801 = vadd.f32 %v2511, %v2753
        %v2802 = vadd.f32 %v2512, %v2754
        %v2803 = vadd.f32 %v2513, %v2755
        %v2804 = vadd.f32 %v2514, %v2756
        %v2805 = vadd.f32 %v2515, %v2757
        %v2806 = vadd.f32 %v2516, %v2758
        %v2807 = vadd.f32 %v2517, %v2759
        %v2808 = vadd.f32 %v2518, %v2760
        %v2809 = vadd.f32 %v2519, %v2761
        %v2810 = vadd.f32 %v2520, %v2762
        %v2811 = vadd.f32 %v2521, %v2763
        %v2812 = vadd.f32 %v2522, %v2764
        %2813 = vrot.lane.b32.xlu0 %v1919, 111
        %v2814 = vpop.permute.xlu0 %2813
        %2815 = vrot.lane.b32.xlu0 %v1920, 111
        %v2816 = vpop.permute.xlu0 %2815
        %2817 = vrot.lane.b32.xlu0 %v1921, 111
        %v2818 = vpop.permute.xlu0 %2817
        %2819 = vrot.lane.b32.xlu0 %v1922, 111
        %v2820 = vpop.permute.xlu0 %2819
        %2821 = vrot.lane.b32.xlu0 %v1923, 111
        %v2822 = vpop.permute.xlu0 %2821
        %2823 = vrot.lane.b32.xlu0 %v1924, 111
        %v2824 = vpop.permute.xlu0 %2823
        %2825 = vrot.lane.b32.xlu0 %v1925, 111
        %v2826 = vpop.permute.xlu0 %2825
        %2827 = vrot.lane.b32.xlu0 %v1926, 111
        %v2828 = vpop.permute.xlu0 %2827
        %2829 = vrot.lane.b32.xlu0 %v1927, 111
        %v2830 = vpop.permute.xlu0 %2829
        %2831 = vrot.lane.b32.xlu0 %v1928, 111
        %v2832 = vpop.permute.xlu0 %2831
        %2833 = vrot.lane.b32.xlu0 %v1929, 111
        %v2834 = vpop.permute.xlu0 %2833
        %2835 = vrot.lane.b32.xlu0 %v1930, 111
        %v2836 = vpop.permute.xlu0 %2835
        %2837 = vrot.lane.b32.xlu0 %v1931, 111
        %v2838 = vpop.permute.xlu0 %2837
        %2839 = vrot.lane.b32.xlu0 %v1932, 111
        %v2840 = vpop.permute.xlu0 %2839
        %2841 = vrot.lane.b32.xlu0 %v1933, 111
        %v2842 = vpop.permute.xlu0 %2841
        %2843 = vrot.lane.b32.xlu0 %v1934, 111
        %v2844 = vpop.permute.xlu0 %2843
        %2845 = vrot.lane.b32.xlu0 %v1935, 111
        %v2846 = vpop.permute.xlu0 %2845
        %2847 = vrot.lane.b32.xlu0 %v1936, 111
        %v2848 = vpop.permute.xlu0 %2847
        %2849 = vrot.lane.b32.xlu0 %v1937, 111
        %v2850 = vpop.permute.xlu0 %2849
        %2851 = vrot.lane.b32.xlu0 %v1938, 111
        %v2852 = vpop.permute.xlu0 %2851
        %2853 = vrot.lane.b32.xlu0 %v1939, 111
        %v2854 = vpop.permute.xlu0 %2853
        %2855 = vrot.lane.b32.xlu0 %v1940, 111
        %v2856 = vpop.permute.xlu0 %2855
        %2857 = vrot.lane.b32.xlu0 %v1941, 111
        %v2858 = vpop.permute.xlu0 %2857
        %2859 = vrot.lane.b32.xlu0 %v1942, 111
        %v2860 = vpop.permute.xlu0 %2859
        %2861 = vrot.lane.b32.xlu0 %v1943, 111
        %v2862 = vpop.permute.xlu0 %2861
        %2863 = vrot.lane.b32.xlu0 %v1944, 111
        %v2864 = vpop.permute.xlu0 %2863
        %2865 = vrot.lane.b32.xlu0 %v1945, 111
        %v2866 = vpop.permute.xlu0 %2865
        %2867 = vrot.lane.b32.xlu0 %v1946, 111
        %v2868 = vpop.permute.xlu0 %2867
        %2869 = vrot.lane.b32.xlu0 %v1947, 111
        %v2870 = vpop.permute.xlu0 %2869
        %2871 = vrot.lane.b32.xlu0 %v1948, 111
        %v2872 = vpop.permute.xlu0 %2871
        %2873 = vrot.lane.b32.xlu0 %v1949, 111
        %v2874 = vpop.permute.xlu0 %2873
        %2875 = vrot.lane.b32.xlu0 %v1950, 111
        %v2876 = vpop.permute.xlu0 %2875
        %2877 = vrot.lane.b32.xlu0 %v1951, 111
        %v2878 = vpop.permute.xlu0 %2877
        %2879 = vrot.lane.b32.xlu0 %v1952, 111
        %v2880 = vpop.permute.xlu0 %2879
        %2881 = vrot.lane.b32.xlu0 %v1953, 111
        %v2882 = vpop.permute.xlu0 %2881
        %2883 = vrot.lane.b32.xlu0 %v1954, 111
        %v2884 = vpop.permute.xlu0 %2883
        %vm2885 = vcmask 908288
        %v2886 = vsel %vm2885, %v2814, %v2816
        %v2887 = vsel %vm2885, %v2816, %v2818
        %v2888 = vsel %vm2885, %v2820, %v2822
        %v2889 = vsel %vm2885, %v2822, %v2824
        %v2890 = vsel %vm2885, %v2826, %v2828
        %v2891 = vsel %vm2885, %v2828, %v2830
        %v2892 = vsel %vm2885, %v2832, %v2834
        %v2893 = vsel %vm2885, %v2834, %v2836
        %v2894 = vsel %vm2885, %v2838, %v2840
        %v2895 = vsel %vm2885, %v2840, %v2842
        %v2896 = vsel %vm2885, %v2844, %v2846
        %v2897 = vsel %vm2885, %v2846, %v2848
        %v2898 = vsel %vm2885, %v2850, %v2852
        %v2899 = vsel %vm2885, %v2852, %v2854
        %v2900 = vsel %vm2885, %v2856, %v2858
        %v2901 = vsel %vm2885, %v2858, %v2860
        %v2902 = vsel %vm2885, %v2862, %v2864
        %v2903 = vsel %vm2885, %v2864, %v2866
        %v2904 = vsel %vm2885, %v2868, %v2870
        %v2905 = vsel %vm2885, %v2870, %v2872
        %v2906 = vsel %vm2885, %v2874, %v2876
        %v2907 = vsel %vm2885, %v2876, %v2878
        %v2908 = vsel %vm2885, %v2880, %v2882
        %v2909 = vsel %vm2885, %v2882, %v2884
        %v2934 = vsel %vm1264, %v2886, 0.0
        %v2935 = vsel %vm1265, %v2887, 0.0
        %v2936 = vsel %vm1264, %v2888, 0.0
        %v2937 = vsel %vm1265, %v2889, 0.0
        %v2938 = vsel %vm1264, %v2890, 0.0
        %v2939 = vsel %vm1265, %v2891, 0.0
        %v2940 = vsel %vm1264, %v2892, 0.0
        %v2941 = vsel %vm1265, %v2893, 0.0
        %v2942 = vsel %vm1264, %v2894, 0.0
        %v2943 = vsel %vm1265, %v2895, 0.0
        %v2944 = vsel %vm1264, %v2896, 0.0
        %v2945 = vsel %vm1265, %v2897, 0.0
        %v2946 = vsel %vm1264, %v2898, 0.0
        %v2947 = vsel %vm1265, %v2899, 0.0
        %v2948 = vsel %vm1264, %v2900, 0.0
        %v2949 = vsel %vm1265, %v2901, 0.0
        %v2950 = vsel %vm1264, %v2902, 0.0
        %v2951 = vsel %vm1265, %v2903, 0.0
        %v2952 = vsel %vm1264, %v2904, 0.0
        %v2953 = vsel %vm1265, %v2905, 0.0
        %v2954 = vsel %vm1264, %v2906, 0.0
        %v2955 = vsel %vm1265, %v2907, 0.0
        %v2956 = vsel %vm1264, %v2908, 0.0
        %v2957 = vsel %vm1265, %v2909, 0.0
        %s2958 = scalar_lea.vmem %s3, 768
        %v2959 = vld [vmem:[%s2958] sm:$0xff]
        %v2960 = vld [vmem:[%s2958 + $0x8] sm:$0xff]
        %v2961 = vld [vmem:[%s2958 + $0x10] sm:$0xff]
        %v2962 = vld [vmem:[%s2958 + $0x18] sm:$0xff]
        %v2963 = vld [vmem:[%s2958 + $0x20] sm:$0xff]
        %v2964 = vld [vmem:[%s2958 + $0x28] sm:$0xff]
        %v2965 = vld [vmem:[%s2958 + $0x30] sm:$0xff]
        %v2966 = vld [vmem:[%s2958 + $0x38] sm:$0xff]
        %v2967 = vld [vmem:[%s2958 + $0x40] sm:$0xff]
        %v2968 = vld [vmem:[%s2958 + $0x48] sm:$0xff]
        %v2969 = vld [vmem:[%s2958 + $0x50] sm:$0xff]
        %v2970 = vld [vmem:[%s2958 + $0x58] sm:$0xff]
        %2972 = vset.pattern.permute.xlu0 0
        %2973 = vperm.xlu0 %2972, %v2959
        %v2974 = vpop.permute.xlu0 %2973
        %2977 = vset.pattern.permute.xlu0 0
        %2978 = vperm.xlu0 %2977, %v2960
        %v2979 = vpop.permute.xlu0 %2978
        %2982 = vset.pattern.permute.xlu0 0
        %2983 = vperm.xlu0 %2982, %v2961
        %v2984 = vpop.permute.xlu0 %2983
        %2987 = vset.pattern.permute.xlu0 0
        %2988 = vperm.xlu0 %2987, %v2962
        %v2989 = vpop.permute.xlu0 %2988
        %2992 = vset.pattern.permute.xlu0 0
        %2993 = vperm.xlu0 %2992, %v2963
        %v2994 = vpop.permute.xlu0 %2993
        %2997 = vset.pattern.permute.xlu0 0
        %2998 = vperm.xlu0 %2997, %v2964
        %v2999 = vpop.permute.xlu0 %2998
        %3002 = vset.pattern.permute.xlu0 0
        %3003 = vperm.xlu0 %3002, %v2965
        %v3004 = vpop.permute.xlu0 %3003
        %3007 = vset.pattern.permute.xlu0 0
        %3008 = vperm.xlu0 %3007, %v2966
        %v3009 = vpop.permute.xlu0 %3008
        %3012 = vset.pattern.permute.xlu0 0
        %3013 = vperm.xlu0 %3012, %v2967
        %v3014 = vpop.permute.xlu0 %3013
        %3017 = vset.pattern.permute.xlu0 0
        %3018 = vperm.xlu0 %3017, %v2968
        %v3019 = vpop.permute.xlu0 %3018
        %3022 = vset.pattern.permute.xlu0 0
        %3023 = vperm.xlu0 %3022, %v2969
        %v3024 = vpop.permute.xlu0 %3023
        %3027 = vset.pattern.permute.xlu0 0
        %3028 = vperm.xlu0 %3027, %v2970
        %v3029 = vpop.permute.xlu0 %3028
        %v3031 = vmul.f32 %v2934, %v2974
        %v3032 = vmul.f32 %v2935, %v2974
        %v3033 = vmul.f32 %v2936, %v2979
        %v3034 = vmul.f32 %v2937, %v2979
        %v3035 = vmul.f32 %v2938, %v2984
        %v3036 = vmul.f32 %v2939, %v2984
        %v3037 = vmul.f32 %v2940, %v2989
        %v3038 = vmul.f32 %v2941, %v2989
        %v3039 = vmul.f32 %v2942, %v2994
        %v3040 = vmul.f32 %v2943, %v2994
        %v3041 = vmul.f32 %v2944, %v2999
        %v3042 = vmul.f32 %v2945, %v2999
        %v3043 = vmul.f32 %v2946, %v3004
        %v3044 = vmul.f32 %v2947, %v3004
        %v3045 = vmul.f32 %v2948, %v3009
        %v3046 = vmul.f32 %v2949, %v3009
        %v3047 = vmul.f32 %v2950, %v3014
        %v3048 = vmul.f32 %v2951, %v3014
        %v3049 = vmul.f32 %v2952, %v3019
        %v3050 = vmul.f32 %v2953, %v3019
        %v3051 = vmul.f32 %v2954, %v3024
        %v3052 = vmul.f32 %v2955, %v3024
        %v3053 = vmul.f32 %v2956, %v3029
        %v3054 = vmul.f32 %v2957, %v3029
        %v3055 = vadd.f32 %v2789, %v3031
        %v3056 = vadd.f32 %v2790, %v3032
        %v3057 = vadd.f32 %v2791, %v3033
        %v3058 = vadd.f32 %v2792, %v3034
        %v3059 = vadd.f32 %v2793, %v3035
        %v3060 = vadd.f32 %v2794, %v3036
        %v3061 = vadd.f32 %v2795, %v3037
        %v3062 = vadd.f32 %v2796, %v3038
        %v3063 = vadd.f32 %v2797, %v3039
        %v3064 = vadd.f32 %v2798, %v3040
        %v3065 = vadd.f32 %v2799, %v3041
        %v3066 = vadd.f32 %v2800, %v3042
        %v3067 = vadd.f32 %v2801, %v3043
        %v3068 = vadd.f32 %v2802, %v3044
        %v3069 = vadd.f32 %v2803, %v3045
        %v3070 = vadd.f32 %v2804, %v3046
        %v3071 = vadd.f32 %v2805, %v3047
        %v3072 = vadd.f32 %v2806, %v3048
        %v3073 = vadd.f32 %v2807, %v3049
        %v3074 = vadd.f32 %v2808, %v3050
        %v3075 = vadd.f32 %v2809, %v3051
        %v3076 = vadd.f32 %v2810, %v3052
        %v3077 = vadd.f32 %v2811, %v3053
        %v3078 = vadd.f32 %v2812, %v3054
        %v3079 = vld [vmem:[%s4] sm:$0xff]
        %v3080 = vld [vmem:[%s4 + $0x8] sm:$0xff]
        %v3081 = vld [vmem:[%s4 + $0x10] sm:$0xff]
        %v3082 = vld [vmem:[%s4 + $0x18] sm:$0xff]
        %v3083 = vld [vmem:[%s4 + $0x20] sm:$0xff]
        %v3084 = vld [vmem:[%s4 + $0x28] sm:$0xff]
        %v3085 = vld [vmem:[%s4 + $0x30] sm:$0xff]
        %v3086 = vld [vmem:[%s4 + $0x38] sm:$0xff]
        %v3087 = vld [vmem:[%s4 + $0x40] sm:$0xff]
        %v3088 = vld [vmem:[%s4 + $0x48] sm:$0xff]
        %v3089 = vld [vmem:[%s4 + $0x50] sm:$0xff]
        %v3090 = vld [vmem:[%s4 + $0x58] sm:$0xff]
        %3092 = vset.pattern.permute.xlu0 0
        %3093 = vperm.xlu0 %3092, %v3079
        %v3094 = vpop.permute.xlu0 %3093
        %3097 = vset.pattern.permute.xlu0 0
        %3098 = vperm.xlu0 %3097, %v3080
        %v3099 = vpop.permute.xlu0 %3098
        %3102 = vset.pattern.permute.xlu0 0
        %3103 = vperm.xlu0 %3102, %v3081
        %v3104 = vpop.permute.xlu0 %3103
        %3107 = vset.pattern.permute.xlu0 0
        %3108 = vperm.xlu0 %3107, %v3082
        %v3109 = vpop.permute.xlu0 %3108
        %3112 = vset.pattern.permute.xlu0 0
        %3113 = vperm.xlu0 %3112, %v3083
        %v3114 = vpop.permute.xlu0 %3113
        %3117 = vset.pattern.permute.xlu0 0
        %3118 = vperm.xlu0 %3117, %v3084
        %v3119 = vpop.permute.xlu0 %3118
        %3122 = vset.pattern.permute.xlu0 0
        %3123 = vperm.xlu0 %3122, %v3085
        %v3124 = vpop.permute.xlu0 %3123
        %3127 = vset.pattern.permute.xlu0 0
        %3128 = vperm.xlu0 %3127, %v3086
        %v3129 = vpop.permute.xlu0 %3128
        %3132 = vset.pattern.permute.xlu0 0
        %3133 = vperm.xlu0 %3132, %v3087
        %v3134 = vpop.permute.xlu0 %3133
        %3137 = vset.pattern.permute.xlu0 0
        %3138 = vperm.xlu0 %3137, %v3088
        %v3139 = vpop.permute.xlu0 %3138
        %3142 = vset.pattern.permute.xlu0 0
        %3143 = vperm.xlu0 %3142, %v3089
        %v3144 = vpop.permute.xlu0 %3143
        %3147 = vset.pattern.permute.xlu0 0
        %3148 = vperm.xlu0 %3147, %v3090
        %v3149 = vpop.permute.xlu0 %3148
        %v3151 = vadd.f32 %v3055, %v3094
        %v3152 = vadd.f32 %v3056, %v3094
        %v3153 = vadd.f32 %v3057, %v3099
        %v3154 = vadd.f32 %v3058, %v3099
        %v3155 = vadd.f32 %v3059, %v3104
        %v3156 = vadd.f32 %v3060, %v3104
        %v3157 = vadd.f32 %v3061, %v3109
        %v3158 = vadd.f32 %v3062, %v3109
        %v3159 = vadd.f32 %v3063, %v3114
        %v3160 = vadd.f32 %v3064, %v3114
        %v3161 = vadd.f32 %v3065, %v3119
        %v3162 = vadd.f32 %v3066, %v3119
        %v3163 = vadd.f32 %v3067, %v3124
        %v3164 = vadd.f32 %v3068, %v3124
        %v3165 = vadd.f32 %v3069, %v3129
        %v3166 = vadd.f32 %v3070, %v3129
        %v3167 = vadd.f32 %v3071, %v3134
        %v3168 = vadd.f32 %v3072, %v3134
        %v3169 = vadd.f32 %v3073, %v3139
        %v3170 = vadd.f32 %v3074, %v3139
        %v3171 = vadd.f32 %v3075, %v3144
        %v3172 = vadd.f32 %v3076, %v3144
        %v3173 = vadd.f32 %v3077, %v3149
        %v3174 = vadd.f32 %v3078, %v3149
        %v3175 = vmax.f32 %v3151, 0.0
        %v3176 = vmax.f32 %v3152, 0.0
        %v3177 = vmax.f32 %v3153, 0.0
        %v3178 = vmax.f32 %v3154, 0.0
        %v3179 = vmax.f32 %v3155, 0.0
        %v3180 = vmax.f32 %v3156, 0.0
        %v3181 = vmax.f32 %v3157, 0.0
        %v3182 = vmax.f32 %v3158, 0.0
        %v3183 = vmax.f32 %v3159, 0.0
        %v3184 = vmax.f32 %v3160, 0.0
        %v3185 = vmax.f32 %v3161, 0.0
        %v3186 = vmax.f32 %v3162, 0.0
        %v3187 = vmax.f32 %v3163, 0.0
        %v3188 = vmax.f32 %v3164, 0.0
        %v3189 = vmax.f32 %v3165, 0.0
        %v3190 = vmax.f32 %v3166, 0.0
        %v3191 = vmax.f32 %v3167, 0.0
        %v3192 = vmax.f32 %v3168, 0.0
        %v3193 = vmax.f32 %v3169, 0.0
        %v3194 = vmax.f32 %v3170, 0.0
        %v3195 = vmax.f32 %v3171, 0.0
        %v3196 = vmax.f32 %v3172, 0.0
        %v3197 = vmax.f32 %v3173, 0.0
        %v3198 = vmax.f32 %v3174, 0.0
        %v3199 = vld [vmem:[%s5] sm:$0xff]
        %v3200 = vld [vmem:[%s5 + $0x8] sm:$0xff]
        %v3201 = vld [vmem:[%s6] sm:$0xff]
        %v3202 = vld [vmem:[%s6 + $0x8] sm:$0xff]
        %3204 = vset.pattern.permute.xlu0 0
        %3205 = vperm.xlu0 %3204, %v3201
        %v3206 = vpop.permute.xlu0 %3205
        %3209 = vset.pattern.permute.xlu0 0
        %3210 = vperm.xlu0 %3209, %v3202
        %v3211 = vpop.permute.xlu0 %3210
        %vm3213 = vcmask 785408
        %v3215 = vsel %vm3213, %v3199, 0
        %v3218 = vsel %vm3213, %v3200, 0
        %3220 = vmatprep.subr.mxu0 %v3176
        %3221 = vmatpush1.msra.mxu0 %v3175
        %3222 = vmatprep.subr.mxu0 %v3178
        %3223 = vmatpush1.msra.mxu0 %v3177
        %3224 = vmatprep.subr.mxu0 %v3180
        %3225 = vmatpush1.msra.mxu0 %v3179
        %3226 = vmatprep.subr.mxu0 %v3182
        %3227 = vmatpush1.msra.mxu0 %v3181
        %3228 = vmatprep.subr.mxu0 %v3184
        %3229 = vmatpush1.msra.mxu0 %v3183
        %3230 = vmatprep.subr.mxu0 %v3186
        %3231 = vmatpush1.msra.mxu0 %v3185
        %3232 = vmatprep.subr.mxu0 %v3188
        %3233 = vmatpush1.msra.mxu0 %v3187
        %3234 = vmatprep.subr.mxu0 %v3190
        %3235 = vmatpush1.msra.mxu0 %v3189
        %3236 = vmatprep.subr.mxu0 %v3192
        %3237 = vmatpush1.msra.mxu0 %v3191
        %3238 = vmatprep.subr.mxu0 %v3194
        %3239 = vmatpush1.msra.mxu0 %v3193
        %3240 = vmatprep.subr.mxu0 %v3196
        %3241 = vmatpush1.msra.mxu0 %v3195
        %3242 = vmatprep.subr.mxu0 %v3198
        %3243 = vmatpush1.msra.mxu0 %v3197
        %3244 = vmatprep.subr.mxu0 0.0
        %3245 = vmatpush1.msra.mxu0 0.0
        %3246 = vmatprep.subr.mxu0 0.0
        %3247 = vmatpush1.msra.mxu0 0.0
        %3248 = vmatprep.subr.mxu0 0.0
        %3249 = vmatpush1.msra.mxu0 0.0
        %3250 = vmatprep.subr.mxu0 0.0
        %3251 = vmatpush1.msra.mxu0 0.0
        %3252 = vmatprep.subr.mxu0 0.0
        %3253 = vmatpush1.msra.mxu0 0.0
        %3254 = vmatprep.subr.mxu0 0.0
        %3255 = vmatpush1.msra.mxu0 0.0
        %3256 = vmatprep.subr.mxu0 0.0
        %3257 = vmatpush1.msra.mxu0 0.0
        %3258 = vmatprep.subr.mxu0 0.0
        %3259 = vmatpush1.msra.mxu0 0.0
        %3260 = vmatprep.subr.mxu0 0.0
        %3261 = vmatpush1.msra.mxu0 0.0
        %3262 = vmatprep.subr.mxu0 0.0
        %3263 = vmatpush1.msra.mxu0 0.0
        %3264 = vmatprep.subr.mxu0 0.0
        %3265 = vmatpush1.msra.mxu0 0.0
        %3266 = vmatprep.subr.mxu0 0.0
        %3267 = vmatpush1.msra.mxu0 0.0
        %3268 = vmatprep.subr.mxu0 0.0
        %3269 = vmatpush1.msra.mxu0 0.0
        %3270 = vmatprep.subr.mxu0 0.0
        %3271 = vmatpush1.msra.mxu0 0.0
        %3272 = vmatprep.subr.mxu0 0.0
        %3273 = vmatpush1.msra.mxu0 0.0
        %3274 = vmatprep.subr.mxu0 0.0
        %3275 = vmatpush1.msra.mxu0 0.0
        %3276 = vmatprep.subr.mxu0 0.0
        %3277 = vmatpush1.msra.mxu0 0.0
        %3278 = vmatprep.subr.mxu0 0.0
        %3279 = vmatpush1.msra.mxu0 0.0
        %3280 = vmatprep.subr.mxu0 0.0
        %3281 = vmatpush1.msra.mxu0 0.0
        %3282 = vmatprep.subr.mxu0 0.0
        %3283 = vmatpush1.msra.mxu0 0.0
        %3284 = vmatprep.mubr.f32.mxu0 0.0
        %3285 = vmatmul.mubr.f32.gmra.mrb[0].mxu0 %v3215
        %v3286 = vpop.f32.mrb[0].mxu0
        %v3287 = vadd.f32 %v3206, %v3286
        %v3288 = vpop.f32.mrb[0].mxu0
        %v3289 = vadd.f32 %v3206, %v3288
        %3290 = vmatprep.mubr.f32.mxu0 0.0
        %3291 = vmatmul.mubr.f32.gmra.mrb[0].mxu0 %v3218
        %v3292 = vpop.f32.mrb[0].mxu0
        %v3293 = vadd.f32 %v3211, %v3292
        %v3294 = vpop.f32.mrb[0].mxu0
        %v3295 = vadd.f32 %v3211, %v3294
        %3296 = vdwg.mxu0
        %v3297 = vadd.f32 %v3287, %v277
        %v3298 = vadd.f32 %v3289, %v278
        %v3299 = vadd.f32 %v3293, %v279
        %v3300 = vadd.f32 %v3295, %v280
        %3301 = vst [vmem:[%s271] sm:$0xff] %v3297
        %3302 = vst [vmem:[%s271 + $0x8] sm:$0xff] %v3298
        %3303 = vst [vmem:[%s271 + $0x10] sm:$0xff] %v3299
        %3304 = vst [vmem:[%s271 + $0x18] sm:$0xff] %v3300
        %s3305 = sand.u32 %s181, 1
        %s3306 = scalar_lea.sflag [#allocation4], %s3305
        %s3307 = sand.u32 %s181, 1
        %s3308 = smul.addr %s3307, 32
        %s3309 = scalar_lea.vmem [#allocation3], %s3308
        // Predicated region
        $region49: #{tpu_custom_call.1} parent=47 // pred_check
          %p3310 = pneg %p191
        $region50: #{tpu_custom_call.1} parent=47 // pred_check_branch
          %3312 = sbr.rel (%p3310) target = $region52
        $region51: #{tpu_custom_call.1} parent=47 // pred_region
          %s3314 = ssub.s32 512, 512
          %3315 = vsyncadd %s3306, %s3314
          %s3316 = smul.addr %s21, 4
          %s3317 = smul.addr %s3316, 128
          %s3318 = scalar_lea.hbm %s7, %s3317
          %s3319 = sshll.u32 %s3309, 4
          %s3320 = int_to_ptr.vmem [resolvable:$true] %s3319
          %3325 = dma.vmem_to_hbm [thread:$0]  %s3320, 512, %s3318, %s3306, 256, 256, 16
        $region52: #{tpu_custom_call.1} parent=47 // pred_fallthru
          _
      $region48: #{tpu_custom_call.1} parent=5 // pred_fallthru
        _
      %p3326 = scmp.le.s32.totalorder 2, %s16
      // Predicated region
      $region53: #{tpu_custom_call.1} parent=5 // pred_check
        %p3327 = pneg %p3326
      $region54: #{tpu_custom_call.1} parent=5 // pred_check_branch
        %3329 = sbr.rel (%p3327) target = $region56
      $region55: #{tpu_custom_call.1} parent=5 // pred_region
        %s3330 = ssub.s32 %s16, 2
        // Predicated region
        $region57: #{tpu_custom_call.1} parent=55 // pred_check
          %p3331 = pneg %p197
        $region58: #{tpu_custom_call.1} parent=55 // pred_check_branch
          %3333 = sbr.rel (%p3331) target = $region60
        $region59: #{tpu_custom_call.1} parent=55 // pred_region
          %s3334 = sand.u32 %s182, 1
          %s3335 = scalar_lea.sflag [#allocation4], %s3334
          %s3336 = sand.u32 %s182, 1
          %s3337 = smul.addr %s3336, 32
          %s3338 = scalar_lea.vmem [#allocation3], %s3337
          %3339 = dma.done %s3335, 512
        $region60: #{tpu_custom_call.1} parent=55 // pred_fallthru
          _
      $region56: #{tpu_custom_call.1} parent=5 // pred_fallthru
        _
    $region6: #{tpu_custom_call.1} parent=1 // loop_footer
      %s20 = sadd.s32 1, %s16
    $region7: #{tpu_custom_call.1} parent=1 // loop_footer_branch
      %15 = sbr.rel target = $region3
    $region8: #{tpu_custom_call.1} parent=1 // loop_exit
      _
    %3340 = vsyncpa [#allocation4], 1
    %s3341 = scalar_lea.sflag [#allocation4], 1
    %3342 = vsyncpa %s3341, 1

</llo_original>
